<compile_context>
chip_gen: v7x
topology: tpu7x:2x2x1
jax: 0.10.0
libtpu: 0.0.40
codegen_flags: <defaults>
</compile_context>

<pallas_src>
import functools

import jax
import jax.numpy as jnp
from jax import lax
from jax.experimental import pallas as pl
from jax.experimental.pallas import tpu as pltpu

NEG_SLOPE = 0.2      # nn.LeakyReLU(0.2)
IN_EPS = 1e-5        # nn.InstanceNorm2d default eps (affine=False, no running stats)
LANES = 128          # TPU lane width -> output-channel padding target


def _round_up(x, m):
    return ((x + m - 1) // m) * m


# ---------------------------------------------------------------------------
# Pallas kernel: one im2col GEMM per grid step + fused bias/InstanceNorm/LeakyReLU
#   p_ref : (S, Kp)        bf16   im2col patches for one sample (K zero-padded)
#   w_ref : (Kp, Cpad)     bf16   whole weight slab
#   b_ref : (1, Cpad)      f32    bias (zero in padded lanes)
#   o_ref : (S, Cpad)      bf16/f32
# ---------------------------------------------------------------------------
def _conv_kernel(p_ref, w_ref, b_ref, o_ref, *, fuse_norm, apply_lrelu):
    y = jnp.dot(p_ref[...], w_ref[...],
                preferred_element_type=jnp.float32)        # (S, Cpad) f32
    y = y + b_ref[...]
    if fuse_norm:
        # InstanceNorm2d(affine=False): per-sample per-channel over spatial,
        # biased variance, eps=1e-5.  Padded lanes are all-zero -> stay zero.
        mean = jnp.mean(y, axis=0, keepdims=True)
        var = jnp.mean((y - mean) ** 2, axis=0, keepdims=True)
        y = (y - mean) * lax.rsqrt(var + IN_EPS)
    if apply_lrelu:
        y = jnp.where(y >= 0, y, NEG_SLOPE * y)
    o_ref[...] = y.astype(o_ref.dtype)


# ---------------------------------------------------------------------------
# Wrapper glue (plain JAX): channels-last im2col over REAL channels, weight
# packing, one pallas_call per layer.
# ---------------------------------------------------------------------------
def _im2col_nhwc(x, kh, kw, stride, pad):
    # x: (B, H, W, C) channels-last. Tap order (i, j) then channel, matching
    # the (kh, kw, Cin, Cout) weight flattening below.
    B, H, W, C = x.shape
    xp = jnp.pad(x, ((0, 0), (pad, pad), (pad, pad), (0, 0)))
    OH = (H + 2 * pad - kh) // stride + 1
    OW = (W + 2 * pad - kw) // stride + 1
    taps = []
    for i in range(kh):
        for j in range(kw):
            taps.append(xp[:, i:i + stride * OH:stride,
                           j:j + stride * OW:stride, :])
    p = jnp.stack(taps, axis=3)                       # (B, OH, OW, kh*kw, C)
    p = p.reshape(B, OH * OW, kh * kw * C)            # (B, S, K)
    return p, OH, OW


def _conv_layer(x_nhwc, w, b, *, stride, pad, fuse_norm, apply_lrelu,
                merge_batch=False, out_dtype=jnp.bfloat16):
    """x_nhwc: (B, H, W, Cin) bf16 channels-last, REAL channel count.
    w: (Cout, Cin, kh, kw) f32 (PyTorch layout), b: (Cout,) f32.
    Returns (B, OH, OW, Cout) out_dtype (padded lanes already stripped)."""
    B = x_nhwc.shape[0]
    Cout, Cin, kh, kw = w.shape
    assert x_nhwc.shape[-1] == Cin
    cout_pad = _round_up(Cout, LANES)

    patches, OH, OW = _im2col_nhwc(x_nhwc, kh, kw, stride, pad)   # (B, S, K)
    S = OH * OW
    K = kh * kw * Cin
    Kp = _round_up(K, LANES)                                       # lane-dense K

    # Weight -> (kh, kw, Cin, Cout) -> (K, Cout), zero-pad to (Kp, cout_pad), bf16.
    w2d = jnp.transpose(w, (2, 3, 1, 0)).reshape(K, Cout)
    w2d = jnp.pad(w2d, ((0, Kp - K), (0, cout_pad - Cout))).astype(jnp.bfloat16)
    b2d = jnp.pad(b, (0, cout_pad - Cout)).reshape(1, cout_pad).astype(jnp.float32)
    patches = jnp.pad(patches, ((0, 0), (0, 0), (0, Kp - K))).astype(jnp.bfloat16)

    if merge_batch:
        # Fold batch into the GEMM M dimension (only valid without InstanceNorm).
        assert not fuse_norm
        Bg, Sg = 1, B * S
        patches = patches.reshape(Bg, Sg, Kp)
    else:
        Bg, Sg = B, S

    out = pl.pallas_call(
        functools.partial(_conv_kernel,
                          fuse_norm=fuse_norm, apply_lrelu=apply_lrelu),
        out_shape=jax.ShapeDtypeStruct((Bg, Sg, cout_pad), out_dtype),
        grid=(Bg,),
        in_specs=[
            pl.BlockSpec((None, Sg, Kp), lambda bi: (bi, 0, 0)),
            pl.BlockSpec((Kp, cout_pad), lambda bi: (0, 0)),
            pl.BlockSpec((1, cout_pad), lambda bi: (0, 0)),
        ],
        out_specs=pl.BlockSpec((None, Sg, cout_pad), lambda bi: (bi, 0, 0)),
        compiler_params=pltpu.CompilerParams(
            dimension_semantics=("parallel",),
            vmem_limit_bytes=32 * 1024 * 1024,
        ),
    )(patches, w2d, b2d)

    out = out.reshape(B, OH, OW, cout_pad)
    # Strip padded lanes NOW so the next layer's K contraction only sees real
    # channels (no dead-lane MXU work / weight DMA downstream).
    return out[..., :Cout]


def init_params(key, in_channels, out_channels, channels):
    # Deterministic synthetic weights (shapes from PatchDiscriminator.__init__).
    dims = [
        (channels, in_channels, 4, 4),
        (channels * 2, channels, 4, 4),
        (channels * 4, channels * 2, 4, 4),
        (channels * 8, channels * 4, 4, 4),
        (out_channels, channels * 8, 3, 3),
    ]
    params = []
    for d in dims:
        key, kw_, kb_ = jax.random.split(key, 3)
        w = 0.1 * jax.random.normal(kw_, d, dtype=jnp.float32)
        b = 0.1 * jax.random.normal(kb_, (d[0],), dtype=jnp.float32)
        params.append((w, b))
    return params


def patch_discriminator_forward(x_nchw, params):
    (w1, b1), (w2, b2), (w3, b3), (w4, b4), (w5, b5) = params

    # NCHW -> NHWC once, bf16 for the MXU.  All intermediates stay
    # channels-last / bf16 with REAL channel counts between layers.
    x = jnp.transpose(x_nchw, (0, 2, 3, 1)).astype(jnp.bfloat16)

    # Conv(4,4,s2,p1) + LeakyReLU
    x = _conv_layer(x, w1, b1, stride=2, pad=1,
                    fuse_norm=False, apply_lrelu=True)
    # Conv(4,4,s2,p1) + InstanceNorm + LeakyReLU   (fused epilogue)
    x = _conv_layer(x, w2, b2, stride=2, pad=1,
                    fuse_norm=True, apply_lrelu=True)
    x = _conv_layer(x, w3, b3, stride=2, pad=1,
                    fuse_norm=True, apply_lrelu=True)
    x = _conv_layer(x, w4, b4, stride=2, pad=1,
                    fuse_norm=True, apply_lrelu=True)
    # Conv(3,3,s1,p1), no norm / activation, batch folded into M, f32 output.
    x = _conv_layer(x, w5, b5, stride=1, pad=1,
                    fuse_norm=False, apply_lrelu=False,
                    merge_batch=True, out_dtype=jnp.float32)

    # Back to PyTorch NCHW.
    return jnp.transpose(x, (0, 3, 1, 2))


if __name__ == "__main__":
    key = jax.random.PRNGKey(0)
    kx, kp = jax.random.split(key)

    B, Cin, H, W = 2, 4, 32, 32
    channels, out_channels = 8, 1

    x = jax.random.normal(kx, (B, Cin, H, W), dtype=jnp.float32)
    params = init_params(kp, Cin, out_channels, channels)

    fwd = jax.jit(patch_discriminator_forward)
    y = fwd(x, params)
    jax.block_until_ready(y)

    # 32 -> 16 -> 8 -> 4 -> 2 (four stride-2 convs); final 3x3 s1 p1 keeps 2x2.
    assert y.shape == (B, out_channels, 2, 2), y.shape
    assert bool(jnp.all(jnp.isfinite(y)))
    print("KERNEL_OK")
</pallas_src>

<mosaic_0001>
module attributes {stable_mosaic.version = 11 : i64} {
  func.func @_conv_kernel(%arg0: i32, %arg1: memref<1x256x128xbf16, #tpu.memory_space<vmem>>, %arg2: memref<128x128xbf16, #tpu.memory_space<vmem>>, %arg3: memref<1x128xf32, #tpu.memory_space<vmem>>, %arg4: memref<1x256x128xbf16, #tpu.memory_space<vmem>>) attributes {dimension_semantics = [#tpu.dimension_semantics<parallel>], iteration_bounds = array<i64: 2>, scalar_prefetch = 0 : i64, scratch_operands = 0 : i64, tpu.core_type = #tpu.core_type<tc>, window_params = [{transform_indices = @transform_0, window_bounds = array<i64: 1, 256, 128>}, {pipeline_mode = #tpu.pipeline_mode<synchronous>, transform_indices = @transform_1, window_bounds = array<i64: 128, 128>}, {pipeline_mode = #tpu.pipeline_mode<synchronous>, transform_indices = @transform_2, window_bounds = array<i64: 1, 128>}, {transform_indices = @transform_3, window_bounds = array<i64: 1, 256, 128>}]} {
    %c0 = arith.constant 0 : index
    %c0_0 = arith.constant 0 : index
    %c0_1 = arith.constant 0 : index
    %0 = vector.load %arg1[%c0, %c0_0, %c0_1] : memref<1x256x128xbf16, #tpu.memory_space<vmem>>, vector<1x256x128xbf16>
    %1 = vector.shape_cast %0 : vector<1x256x128xbf16> to vector<256x128xbf16>
    %c0_2 = arith.constant 0 : index
    %c0_3 = arith.constant 0 : index
    %2 = vector.load %arg2[%c0_2, %c0_3] : memref<128x128xbf16, #tpu.memory_space<vmem>>, vector<128x128xbf16>
    %cst = arith.constant dense<0.000000e+00> : vector<256x128xf32>
    %3 = tpu.matmul %1, %2, %cst {dimension_numbers = #tpu.dot_dimension_numbers<[1], [0], [0], [1], [0, 0, 1, 1], [], []>} : vector<256x128xbf16>, vector<128x128xbf16>, vector<256x128xf32> -> vector<256x128xf32>
    %c0_4 = arith.constant 0 : index
    %c0_5 = arith.constant 0 : index
    %4 = vector.load %arg3[%c0_4, %c0_5] : memref<1x128xf32, #tpu.memory_space<vmem>>, vector<1x128xf32>
    %5 = vector.broadcast %4 : vector<1x128xf32> to vector<256x128xf32>
    %6 = arith.addf %3, %5 : vector<256x128xf32>
    %cst_6 = arith.constant 0.000000e+00 : f32
    %7 = vector.broadcast %cst_6 : f32 to vector<256x128xf32>
    %8 = arith.cmpf oge, %6, %7 : vector<256x128xf32>
    %cst_7 = arith.constant 2.000000e-01 : f32
    %9 = vector.broadcast %cst_7 : f32 to vector<256x128xf32>
    %10 = arith.mulf %9, %6 : vector<256x128xf32>
    %11 = arith.select %8, %6, %10 : vector<256x128xi1>, vector<256x128xf32>
    %12 = arith.truncf %11 : vector<256x128xf32> to vector<256x128xbf16>
    %c0_8 = arith.constant 0 : index
    %c0_9 = arith.constant 0 : index
    %c0_10 = arith.constant 0 : index
    %13 = vector.load %arg4[%c0_8, %c0_9, %c0_10] : memref<1x256x128xbf16, #tpu.memory_space<vmem>>, vector<1x256x128xbf16>
    %14 = vector.shape_cast %13 : vector<1x256x128xbf16> to vector<256x128xbf16>
    %15 = vector.shape_cast %12 : vector<256x128xbf16> to vector<1x256x128xbf16>
    tpu.vector_store %arg4[%c0_8, %c0_9, %c0_10], %15 {strides = array<i32>} : memref<1x256x128xbf16, #tpu.memory_space<vmem>>, vector<1x256x128xbf16>,
    return
  }
  func.func @transform_0(%arg0: i32) -> (i32, i32, i32) {
    %c0_i32 = arith.constant 0 : i32
    %c0_i32_0 = arith.constant 0 : i32
    %c0_i32_1 = arith.constant 0 : i32
    return %arg0, %c0_i32, %c0_i32_0 : i32, i32, i32
  }
  func.func @transform_1(%arg0: i32) -> (i32, i32) {
    %c0_i32 = arith.constant 0 : i32
    %c0_i32_0 = arith.constant 0 : i32
    %c0_i32_1 = arith.constant 0 : i32
    return %c0_i32, %c0_i32_0 : i32, i32
  }
  func.func @transform_2(%arg0: i32) -> (i32, i32) {
    %c0_i32 = arith.constant 0 : i32
    %c0_i32_0 = arith.constant 0 : i32
    %c0_i32_1 = arith.constant 0 : i32
    return %c0_i32, %c0_i32_0 : i32, i32
  }
  func.func @transform_3(%arg0: i32) -> (i32, i32, i32) {
    %c0_i32 = arith.constant 0 : i32
    %c0_i32_0 = arith.constant 0 : i32
    %c0_i32_1 = arith.constant 0 : i32
    return %arg0, %c0_i32, %c0_i32_0 : i32, i32, i32
  }
}

module attributes {stable_mosaic.version = 11 : i64} {
  func.func @_conv_kernel(%arg0: i32, %arg1: memref<1x64x128xbf16, #tpu.memory_space<vmem>>, %arg2: memref<128x128xbf16, #tpu.memory_space<vmem>>, %arg3: memref<1x128xf32, #tpu.memory_space<vmem>>, %arg4: memref<1x64x128xbf16, #tpu.memory_space<vmem>>) attributes {dimension_semantics = [#tpu.dimension_semantics<parallel>], iteration_bounds = array<i64: 2>, scalar_prefetch = 0 : i64, scratch_operands = 0 : i64, tpu.core_type = #tpu.core_type<tc>, window_params = [{transform_indices = @transform_0, window_bounds = array<i64: 1, 64, 128>}, {pipeline_mode = #tpu.pipeline_mode<synchronous>, transform_indices = @transform_1, window_bounds = array<i64: 128, 128>}, {pipeline_mode = #tpu.pipeline_mode<synchronous>, transform_indices = @transform_2, window_bounds = array<i64: 1, 128>}, {transform_indices = @transform_3, window_bounds = array<i64: 1, 64, 128>}]} {
    %c0 = arith.constant 0 : index
    %c0_0 = arith.constant 0 : index
    %c0_1 = arith.constant 0 : index
    %0 = vector.load %arg1[%c0, %c0_0, %c0_1] : memref<1x64x128xbf16, #tpu.memory_space<vmem>>, vector<1x64x128xbf16>
    %1 = vector.shape_cast %0 : vector<1x64x128xbf16> to vector<64x128xbf16>
    %c0_2 = arith.constant 0 : index
    %c0_3 = arith.constant 0 : index
    %2 = vector.load %arg2[%c0_2, %c0_3] : memref<128x128xbf16, #tpu.memory_space<vmem>>, vector<128x128xbf16>
    %cst = arith.constant dense<0.000000e+00> : vector<64x128xf32>
    %3 = tpu.matmul %1, %2, %cst {dimension_numbers = #tpu.dot_dimension_numbers<[1], [0], [0], [1], [0, 0, 1, 1], [], []>} : vector<64x128xbf16>, vector<128x128xbf16>, vector<64x128xf32> -> vector<64x128xf32>
    %c0_4 = arith.constant 0 : index
    %c0_5 = arith.constant 0 : index
    %4 = vector.load %arg3[%c0_4, %c0_5] : memref<1x128xf32, #tpu.memory_space<vmem>>, vector<1x128xf32>
    %5 = vector.broadcast %4 : vector<1x128xf32> to vector<64x128xf32>
    %6 = arith.addf %3, %5 : vector<64x128xf32>
    %cst_6 = arith.constant dense<0.000000e+00> : vector<128xf32>
    %7 = vector.multi_reduction <add>, %6, %cst_6 [0] : vector<64x128xf32> to vector<128xf32>
    %8 = vector.shape_cast %7 : vector<128xf32> to vector<1x128xf32>
    %cst_7 = arith.constant 6.400000e+01 : f32
    %9 = vector.broadcast %cst_7 : f32 to vector<1x128xf32>
    %10 = arith.divf %8, %9 : vector<1x128xf32>
    %11 = vector.broadcast %10 : vector<1x128xf32> to vector<64x128xf32>
    %12 = arith.subf %6, %11 : vector<64x128xf32>
    %13 = arith.mulf %12, %12 : vector<64x128xf32>
    %cst_8 = arith.constant dense<0.000000e+00> : vector<128xf32>
    %14 = vector.multi_reduction <add>, %13, %cst_8 [0] : vector<64x128xf32> to vector<128xf32>
    %15 = vector.shape_cast %14 : vector<128xf32> to vector<1x128xf32>
    %cst_9 = arith.constant 6.400000e+01 : f32
    %16 = vector.broadcast %cst_9 : f32 to vector<1x128xf32>
    %17 = arith.divf %15, %16 : vector<1x128xf32>
    %18 = vector.broadcast %10 : vector<1x128xf32> to vector<64x128xf32>
    %19 = arith.subf %6, %18 : vector<64x128xf32>
    %cst_10 = arith.constant 9.99999974E-6 : f32
    %20 = vector.broadcast %cst_10 : f32 to vector<1x128xf32>
    %21 = arith.addf %17, %20 : vector<1x128xf32>
    %22 = math.rsqrt %21 : vector<1x128xf32>
    %23 = vector.broadcast %22 : vector<1x128xf32> to vector<64x128xf32>
    %24 = arith.mulf %19, %23 : vector<64x128xf32>
    %cst_11 = arith.constant 0.000000e+00 : f32
    %25 = vector.broadcast %cst_11 : f32 to vector<64x128xf32>
    %26 = arith.cmpf oge, %24, %25 : vector<64x128xf32>
    %cst_12 = arith.constant 2.000000e-01 : f32
    %27 = vector.broadcast %cst_12 : f32 to vector<64x128xf32>
    %28 = arith.mulf %27, %24 : vector<64x128xf32>
    %29 = arith.select %26, %24, %28 : vector<64x128xi1>, vector<64x128xf32>
    %30 = arith.truncf %29 : vector<64x128xf32> to vector<64x128xbf16>
    %c0_13 = arith.constant 0 : index
    %c0_14 = arith.constant 0 : index
    %c0_15 = arith.constant 0 : index
    %31 = vector.load %arg4[%c0_13, %c0_14, %c0_15] : memref<1x64x128xbf16, #tpu.memory_space<vmem>>, vector<1x64x128xbf16>
    %32 = vector.shape_cast %31 : vector<1x64x128xbf16> to vector<64x128xbf16>
    %33 = vector.shape_cast %30 : vector<64x128xbf16> to vector<1x64x128xbf16>
    tpu.vector_store %arg4[%c0_13, %c0_14, %c0_15], %33 {strides = array<i32>} : memref<1x64x128xbf16, #tpu.memory_space<vmem>>, vector<1x64x128xbf16>,
    return
  }
  func.func @transform_0(%arg0: i32) -> (i32, i32, i32) {
    %c0_i32 = arith.constant 0 : i32
    %c0_i32_0 = arith.constant 0 : i32
    %c0_i32_1 = arith.constant 0 : i32
    return %arg0, %c0_i32, %c0_i32_0 : i32, i32, i32
  }
  func.func @transform_1(%arg0: i32) -> (i32, i32) {
    %c0_i32 = arith.constant 0 : i32
    %c0_i32_0 = arith.constant 0 : i32
    %c0_i32_1 = arith.constant 0 : i32
    return %c0_i32, %c0_i32_0 : i32, i32
  }
  func.func @transform_2(%arg0: i32) -> (i32, i32) {
    %c0_i32 = arith.constant 0 : i32
    %c0_i32_0 = arith.constant 0 : i32
    %c0_i32_1 = arith.constant 0 : i32
    return %c0_i32, %c0_i32_0 : i32, i32
  }
  func.func @transform_3(%arg0: i32) -> (i32, i32, i32) {
    %c0_i32 = arith.constant 0 : i32
    %c0_i32_0 = arith.constant 0 : i32
    %c0_i32_1 = arith.constant 0 : i32
    return %arg0, %c0_i32, %c0_i32_0 : i32, i32, i32
  }
}

module attributes {stable_mosaic.version = 11 : i64} {
  func.func @_conv_kernel(%arg0: i32, %arg1: memref<1x16x256xbf16, #tpu.memory_space<vmem>>, %arg2: memref<256x128xbf16, #tpu.memory_space<vmem>>, %arg3: memref<1x128xf32, #tpu.memory_space<vmem>>, %arg4: memref<1x16x128xbf16, #tpu.memory_space<vmem>>) attributes {dimension_semantics = [#tpu.dimension_semantics<parallel>], iteration_bounds = array<i64: 2>, scalar_prefetch = 0 : i64, scratch_operands = 0 : i64, tpu.core_type = #tpu.core_type<tc>, window_params = [{transform_indices = @transform_0, window_bounds = array<i64: 1, 16, 256>}, {pipeline_mode = #tpu.pipeline_mode<synchronous>, transform_indices = @transform_1, window_bounds = array<i64: 256, 128>}, {pipeline_mode = #tpu.pipeline_mode<synchronous>, transform_indices = @transform_2, window_bounds = array<i64: 1, 128>}, {transform_indices = @transform_3, window_bounds = array<i64: 1, 16, 128>}]} {
    %c0 = arith.constant 0 : index
    %c0_0 = arith.constant 0 : index
    %c0_1 = arith.constant 0 : index
    %0 = vector.load %arg1[%c0, %c0_0, %c0_1] : memref<1x16x256xbf16, #tpu.memory_space<vmem>>, vector<1x16x256xbf16>
    %1 = vector.shape_cast %0 : vector<1x16x256xbf16> to vector<16x256xbf16>
    %c0_2 = arith.constant 0 : index
    %c0_3 = arith.constant 0 : index
    %2 = vector.load %arg2[%c0_2, %c0_3] : memref<256x128xbf16, #tpu.memory_space<vmem>>, vector<256x128xbf16>
    %cst = arith.constant dense<0.000000e+00> : vector<16x128xf32>
    %3 = tpu.matmul %1, %2, %cst {dimension_numbers = #tpu.dot_dimension_numbers<[1], [0], [0], [1], [0, 0, 1, 1], [], []>} : vector<16x256xbf16>, vector<256x128xbf16>, vector<16x128xf32> -> vector<16x128xf32>
    %c0_4 = arith.constant 0 : index
    %c0_5 = arith.constant 0 : index
    %4 = vector.load %arg3[%c0_4, %c0_5] : memref<1x128xf32, #tpu.memory_space<vmem>>, vector<1x128xf32>
    %5 = vector.broadcast %4 : vector<1x128xf32> to vector<16x128xf32>
    %6 = arith.addf %3, %5 : vector<16x128xf32>
    %cst_6 = arith.constant dense<0.000000e+00> : vector<128xf32>
    %7 = vector.multi_reduction <add>, %6, %cst_6 [0] : vector<16x128xf32> to vector<128xf32>
    %8 = vector.shape_cast %7 : vector<128xf32> to vector<1x128xf32>
    %cst_7 = arith.constant 1.600000e+01 : f32
    %9 = vector.broadcast %cst_7 : f32 to vector<1x128xf32>
    %10 = arith.divf %8, %9 : vector<1x128xf32>
    %11 = vector.broadcast %10 : vector<1x128xf32> to vector<16x128xf32>
    %12 = arith.subf %6, %11 : vector<16x128xf32>
    %13 = arith.mulf %12, %12 : vector<16x128xf32>
    %cst_8 = arith.constant dense<0.000000e+00> : vector<128xf32>
    %14 = vector.multi_reduction <add>, %13, %cst_8 [0] : vector<16x128xf32> to vector<128xf32>
    %15 = vector.shape_cast %14 : vector<128xf32> to vector<1x128xf32>
    %cst_9 = arith.constant 1.600000e+01 : f32
    %16 = vector.broadcast %cst_9 : f32 to vector<1x128xf32>
    %17 = arith.divf %15, %16 : vector<1x128xf32>
    %18 = vector.broadcast %10 : vector<1x128xf32> to vector<16x128xf32>
    %19 = arith.subf %6, %18 : vector<16x128xf32>
    %cst_10 = arith.constant 9.99999974E-6 : f32
    %20 = vector.broadcast %cst_10 : f32 to vector<1x128xf32>
    %21 = arith.addf %17, %20 : vector<1x128xf32>
    %22 = math.rsqrt %21 : vector<1x128xf32>
    %23 = vector.broadcast %22 : vector<1x128xf32> to vector<16x128xf32>
    %24 = arith.mulf %19, %23 : vector<16x128xf32>
    %cst_11 = arith.constant 0.000000e+00 : f32
    %25 = vector.broadcast %cst_11 : f32 to vector<16x128xf32>
    %26 = arith.cmpf oge, %24, %25 : vector<16x128xf32>
    %cst_12 = arith.constant 2.000000e-01 : f32
    %27 = vector.broadcast %cst_12 : f32 to vector<16x128xf32>
    %28 = arith.mulf %27, %24 : vector<16x128xf32>
    %29 = arith.select %26, %24, %28 : vector<16x128xi1>, vector<16x128xf32>
    %30 = arith.truncf %29 : vector<16x128xf32> to vector<16x128xbf16>
    %c0_13 = arith.constant 0 : index
    %c0_14 = arith.constant 0 : index
    %c0_15 = arith.constant 0 : index
    %31 = vector.load %arg4[%c0_13, %c0_14, %c0_15] : memref<1x16x128xbf16, #tpu.memory_space<vmem>>, vector<1x16x128xbf16>
    %32 = vector.shape_cast %31 : vector<1x16x128xbf16> to vector<16x128xbf16>
    %33 = vector.shape_cast %30 : vector<16x128xbf16> to vector<1x16x128xbf16>
    tpu.vector_store %arg4[%c0_13, %c0_14, %c0_15], %33 {strides = array<i32>} : memref<1x16x128xbf16, #tpu.memory_space<vmem>>, vector<1x16x128xbf16>,
    return
  }
  func.func @transform_0(%arg0: i32) -> (i32, i32, i32) {
    %c0_i32 = arith.constant 0 : i32
    %c0_i32_0 = arith.constant 0 : i32
    %c0_i32_1 = arith.constant 0 : i32
    return %arg0, %c0_i32, %c0_i32_0 : i32, i32, i32
  }
  func.func @transform_1(%arg0: i32) -> (i32, i32) {
    %c0_i32 = arith.constant 0 : i32
    %c0_i32_0 = arith.constant 0 : i32
    %c0_i32_1 = arith.constant 0 : i32
    return %c0_i32, %c0_i32_0 : i32, i32
  }
  func.func @transform_2(%arg0: i32) -> (i32, i32) {
    %c0_i32 = arith.constant 0 : i32
    %c0_i32_0 = arith.constant 0 : i32
    %c0_i32_1 = arith.constant 0 : i32
    return %c0_i32, %c0_i32_0 : i32, i32
  }
  func.func @transform_3(%arg0: i32) -> (i32, i32, i32) {
    %c0_i32 = arith.constant 0 : i32
    %c0_i32_0 = arith.constant 0 : i32
    %c0_i32_1 = arith.constant 0 : i32
    return %arg0, %c0_i32, %c0_i32_0 : i32, i32, i32
  }
}

module attributes {stable_mosaic.version = 11 : i64} {
  func.func @_conv_kernel(%arg0: i32, %arg1: memref<1x4x512xbf16, #tpu.memory_space<vmem>>, %arg2: memref<512x128xbf16, #tpu.memory_space<vmem>>, %arg3: memref<1x128xf32, #tpu.memory_space<vmem>>, %arg4: memref<1x4x128xbf16, #tpu.memory_space<vmem>>) attributes {dimension_semantics = [#tpu.dimension_semantics<parallel>], iteration_bounds = array<i64: 2>, scalar_prefetch = 0 : i64, scratch_operands = 0 : i64, tpu.core_type = #tpu.core_type<tc>, window_params = [{transform_indices = @transform_0, window_bounds = array<i64: 1, 4, 512>}, {pipeline_mode = #tpu.pipeline_mode<synchronous>, transform_indices = @transform_1, window_bounds = array<i64: 512, 128>}, {pipeline_mode = #tpu.pipeline_mode<synchronous>, transform_indices = @transform_2, window_bounds = array<i64: 1, 128>}, {transform_indices = @transform_3, window_bounds = array<i64: 1, 4, 128>}]} {
    %c0 = arith.constant 0 : index
    %c0_0 = arith.constant 0 : index
    %c0_1 = arith.constant 0 : index
    %0 = vector.load %arg1[%c0, %c0_0, %c0_1] : memref<1x4x512xbf16, #tpu.memory_space<vmem>>, vector<1x4x512xbf16>
    %1 = vector.shape_cast %0 : vector<1x4x512xbf16> to vector<4x512xbf16>
    %c0_2 = arith.constant 0 : index
    %c0_3 = arith.constant 0 : index
    %2 = vector.load %arg2[%c0_2, %c0_3] : memref<512x128xbf16, #tpu.memory_space<vmem>>, vector<512x128xbf16>
    %cst = arith.constant dense<0.000000e+00> : vector<4x128xf32>
    %3 = tpu.matmul %1, %2, %cst {dimension_numbers = #tpu.dot_dimension_numbers<[1], [0], [0], [1], [0, 0, 1, 1], [], []>} : vector<4x512xbf16>, vector<512x128xbf16>, vector<4x128xf32> -> vector<4x128xf32>
    %c0_4 = arith.constant 0 : index
    %c0_5 = arith.constant 0 : index
    %4 = vector.load %arg3[%c0_4, %c0_5] : memref<1x128xf32, #tpu.memory_space<vmem>>, vector<1x128xf32>
    %5 = vector.broadcast %4 : vector<1x128xf32> to vector<4x128xf32>
    %6 = arith.addf %3, %5 : vector<4x128xf32>
    %cst_6 = arith.constant dense<0.000000e+00> : vector<128xf32>
    %7 = vector.multi_reduction <add>, %6, %cst_6 [0] : vector<4x128xf32> to vector<128xf32>
    %8 = vector.shape_cast %7 : vector<128xf32> to vector<1x128xf32>
    %cst_7 = arith.constant 4.000000e+00 : f32
    %9 = vector.broadcast %cst_7 : f32 to vector<1x128xf32>
    %10 = arith.divf %8, %9 : vector<1x128xf32>
    %11 = vector.broadcast %10 : vector<1x128xf32> to vector<4x128xf32>
    %12 = arith.subf %6, %11 : vector<4x128xf32>
    %13 = arith.mulf %12, %12 : vector<4x128xf32>
    %cst_8 = arith.constant dense<0.000000e+00> : vector<128xf32>
    %14 = vector.multi_reduction <add>, %13, %cst_8 [0] : vector<4x128xf32> to vector<128xf32>
    %15 = vector.shape_cast %14 : vector<128xf32> to vector<1x128xf32>
    %cst_9 = arith.constant 4.000000e+00 : f32
    %16 = vector.broadcast %cst_9 : f32 to vector<1x128xf32>
    %17 = arith.divf %15, %16 : vector<1x128xf32>
    %18 = vector.broadcast %10 : vector<1x128xf32> to vector<4x128xf32>
    %19 = arith.subf %6, %18 : vector<4x128xf32>
    %cst_10 = arith.constant 9.99999974E-6 : f32
    %20 = vector.broadcast %cst_10 : f32 to vector<1x128xf32>
    %21 = arith.addf %17, %20 : vector<1x128xf32>
    %22 = math.rsqrt %21 : vector<1x128xf32>
    %23 = vector.broadcast %22 : vector<1x128xf32> to vector<4x128xf32>
    %24 = arith.mulf %19, %23 : vector<4x128xf32>
    %cst_11 = arith.constant 0.000000e+00 : f32
    %25 = vector.broadcast %cst_11 : f32 to vector<4x128xf32>
    %26 = arith.cmpf oge, %24, %25 : vector<4x128xf32>
    %cst_12 = arith.constant 2.000000e-01 : f32
    %27 = vector.broadcast %cst_12 : f32 to vector<4x128xf32>
    %28 = arith.mulf %27, %24 : vector<4x128xf32>
    %29 = arith.select %26, %24, %28 : vector<4x128xi1>, vector<4x128xf32>
    %30 = arith.truncf %29 : vector<4x128xf32> to vector<4x128xbf16>
    %c0_13 = arith.constant 0 : index
    %c0_14 = arith.constant 0 : index
    %c0_15 = arith.constant 0 : index
    %31 = vector.load %arg4[%c0_13, %c0_14, %c0_15] : memref<1x4x128xbf16, #tpu.memory_space<vmem>>, vector<1x4x128xbf16>
    %32 = vector.shape_cast %31 : vector<1x4x128xbf16> to vector<4x128xbf16>
    %33 = vector.shape_cast %30 : vector<4x128xbf16> to vector<1x4x128xbf16>
    tpu.vector_store %arg4[%c0_13, %c0_14, %c0_15], %33 {strides = array<i32>} : memref<1x4x128xbf16, #tpu.memory_space<vmem>>, vector<1x4x128xbf16>,
    return
  }
  func.func @transform_0(%arg0: i32) -> (i32, i32, i32) {
    %c0_i32 = arith.constant 0 : i32
    %c0_i32_0 = arith.constant 0 : i32
    %c0_i32_1 = arith.constant 0 : i32
    return %arg0, %c0_i32, %c0_i32_0 : i32, i32, i32
  }
  func.func @transform_1(%arg0: i32) -> (i32, i32) {
    %c0_i32 = arith.constant 0 : i32
    %c0_i32_0 = arith.constant 0 : i32
    %c0_i32_1 = arith.constant 0 : i32
    return %c0_i32, %c0_i32_0 : i32, i32
  }
  func.func @transform_2(%arg0: i32) -> (i32, i32) {
    %c0_i32 = arith.constant 0 : i32
    %c0_i32_0 = arith.constant 0 : i32
    %c0_i32_1 = arith.constant 0 : i32
    return %c0_i32, %c0_i32_0 : i32, i32
  }
  func.func @transform_3(%arg0: i32) -> (i32, i32, i32) {
    %c0_i32 = arith.constant 0 : i32
    %c0_i32_0 = arith.constant 0 : i32
    %c0_i32_1 = arith.constant 0 : i32
    return %arg0, %c0_i32, %c0_i32_0 : i32, i32, i32
  }
}

module attributes {stable_mosaic.version = 11 : i64} {
  func.func @_conv_kernel(%arg0: i32, %arg1: memref<1x8x640xbf16, #tpu.memory_space<vmem>>, %arg2: memref<640x128xbf16, #tpu.memory_space<vmem>>, %arg3: memref<1x128xf32, #tpu.memory_space<vmem>>, %arg4: memref<1x8x128xf32, #tpu.memory_space<vmem>>) attributes {dimension_semantics = [#tpu.dimension_semantics<parallel>], iteration_bounds = array<i64: 1>, scalar_prefetch = 0 : i64, scratch_operands = 0 : i64, tpu.core_type = #tpu.core_type<tc>, window_params = [{transform_indices = @transform_0, window_bounds = array<i64: 1, 8, 640>}, {pipeline_mode = #tpu.pipeline_mode<synchronous>, transform_indices = @transform_1, window_bounds = array<i64: 640, 128>}, {pipeline_mode = #tpu.pipeline_mode<synchronous>, transform_indices = @transform_2, window_bounds = array<i64: 1, 128>}, {transform_indices = @transform_3, window_bounds = array<i64: 1, 8, 128>}]} {
    %c0 = arith.constant 0 : index
    %c0_0 = arith.constant 0 : index
    %c0_1 = arith.constant 0 : index
    %0 = vector.load %arg1[%c0, %c0_0, %c0_1] : memref<1x8x640xbf16, #tpu.memory_space<vmem>>, vector<1x8x640xbf16>
    %1 = vector.shape_cast %0 : vector<1x8x640xbf16> to vector<8x640xbf16>
    %c0_2 = arith.constant 0 : index
    %c0_3 = arith.constant 0 : index
    %2 = vector.load %arg2[%c0_2, %c0_3] : memref<640x128xbf16, #tpu.memory_space<vmem>>, vector<640x128xbf16>
    %cst = arith.constant dense<0.000000e+00> : vector<8x128xf32>
    %3 = tpu.matmul %1, %2, %cst {dimension_numbers = #tpu.dot_dimension_numbers<[1], [0], [0], [1], [0, 0, 1, 1], [], []>} : vector<8x640xbf16>, vector<640x128xbf16>, vector<8x128xf32> -> vector<8x128xf32>
    %c0_4 = arith.constant 0 : index
    %c0_5 = arith.constant 0 : index
    %4 = vector.load %arg3[%c0_4, %c0_5] : memref<1x128xf32, #tpu.memory_space<vmem>>, vector<1x128xf32>
    %5 = vector.broadcast %4 : vector<1x128xf32> to vector<8x128xf32>
    %6 = arith.addf %3, %5 : vector<8x128xf32>
    %c0_6 = arith.constant 0 : index
    %c0_7 = arith.constant 0 : index
    %c0_8 = arith.constant 0 : index
    %7 = vector.load %arg4[%c0_6, %c0_7, %c0_8] : memref<1x8x128xf32, #tpu.memory_space<vmem>>, vector<1x8x128xf32>
    %8 = vector.shape_cast %7 : vector<1x8x128xf32> to vector<8x128xf32>
    %9 = vector.shape_cast %6 : vector<8x128xf32> to vector<1x8x128xf32>
    tpu.vector_store %arg4[%c0_6, %c0_7, %c0_8], %9 {strides = array<i32>} : memref<1x8x128xf32, #tpu.memory_space<vmem>>, vector<1x8x128xf32>,
    return
  }
  func.func @transform_0(%arg0: i32) -> (i32, i32, i32) {
    %c0_i32 = arith.constant 0 : i32
    %c0_i32_0 = arith.constant 0 : i32
    %c0_i32_1 = arith.constant 0 : i32
    return %arg0, %c0_i32, %c0_i32_0 : i32, i32, i32
  }
  func.func @transform_1(%arg0: i32) -> (i32, i32) {
    %c0_i32 = arith.constant 0 : i32
    %c0_i32_0 = arith.constant 0 : i32
    %c0_i32_1 = arith.constant 0 : i32
    return %c0_i32, %c0_i32_0 : i32, i32
  }
  func.func @transform_2(%arg0: i32) -> (i32, i32) {
    %c0_i32 = arith.constant 0 : i32
    %c0_i32_0 = arith.constant 0 : i32
    %c0_i32_1 = arith.constant 0 : i32
    return %c0_i32, %c0_i32_0 : i32, i32
  }
  func.func @transform_3(%arg0: i32) -> (i32, i32, i32) {
    %c0_i32 = arith.constant 0 : i32
    %c0_i32_0 = arith.constant 0 : i32
    %c0_i32_1 = arith.constant 0 : i32
    return %arg0, %c0_i32, %c0_i32_0 : i32, i32, i32
  }
}

</mosaic_0001>

<llo_original>
// kernel: patch_discriminator_forward.5
$region0: #{patch_discriminator_forward.5}
  #allocation0 [shape = 'u32[]', space=smem, size = 0x4, offset = 0x4, fixed_abs, tag = 'smem constant byte address 0x4 - core index']
  #allocation1 [shape = 'u32[144,128]{1,0:T(1,128)}', space=vmem, size = 0x12000, scoped, tag = 'internal scratch']
  %s0 = inlined_call_operand.vmem [shape: bf16[2,256,128], index: 0, kind: input, shape index: {}]
  %s1 = inlined_call_operand.vmem [shape: bf16[128,128], index: 1, kind: input, shape index: {}]
  %s2 = inlined_call_operand.vmem [shape: f32[1,128], index: 2, kind: input, shape index: {}]
  %s3 = inlined_call_operand.vmem [shape: bf16[2,256,128], index: 3, kind: output, shape index: {}]
  %s4 = sld [smem:[#allocation0]]
  $region45: #{patch_discriminator_forward.5} parent=0
    _
  %s6 = ssub.s32 1, %s4
  %s7 = scalar_select 0, %s6, %s4
  loop: start=0, step=1, limit=4
  $region2: #{patch_discriminator_forward.5} parent=0 // loop_pre_header
    _
  $region3: #{patch_discriminator_forward.5} parent=0 // loop_header
    %s9 = sphi 0, %s13
    %p10 = scmp.ge.s32.totalorder %s9, 4
    %s19 = sphi 0, %s21
    %s22 = sphi 0, %s19
    %s23 = sphi 0, %s22
    %s39 = sphi 0, %s23
    %s43 = sphi 0, %s43
    %s45 = sphi 0, %s43
    %s46 = sphi 0, %s45
    %s60 = sphi 0, %s46
    %s64 = sphi 0, %s64
    %s66 = sphi 0, %s64
    %s67 = sphi 0, %s66
    %s81 = sphi 0, %s67
    %s87 = sphi 0, %s89
    %s90 = sphi 0, %s87
    %s91 = sphi 0, %s90
    %s107 = sphi 0, %s91
  $region4: #{patch_discriminator_forward.5} parent=0 // loop_header_branch
    %12 = sbr.rel (%p10) target = $region8
  $region5: #{patch_discriminator_forward.5} parent=0 // loop_body
    %s14 = ssub.s32 %s9, 1
    %s15 = ssub.s32 %s9, 2
    %s16 = sadd.s32 %s9, 1
    %s17 = ssub.s32 %s9, %s16
    %p18 = scmp.eq.s32.totalorder %s17, 0
    %s20 = sadd.s32 %s19, 1
    %s21 = scalar_select %p18, %s19, %s20
    %p24 = pneg %p18
    %p25 = scmp.eq.s32.totalorder %s9, 1
    %p26 = por %p24, %p25
    %p27 = scmp.ne.s32.totalorder %s19, %s22
    %p28 = scmp.eq.s32.totalorder %s9, 0
    %p29 = por %p27, %p28
    %p30 = scmp.ne.s32.totalorder %s19, %s22
    %p31 = scmp.eq.s32.totalorder %s14, 1
    %p32 = por %p30, %p31
    %p33 = scmp.ne.s32.totalorder %s22, %s23
    %p34 = scmp.eq.s32.totalorder %s14, 0
    %p35 = por %p33, %p34
    %p36 = scmp.ne.s32.totalorder %s22, %s23
    %p37 = scmp.eq.s32.totalorder %s15, 1
    %p38 = por %p36, %p37
    %p40 = scmp.ne.s32.totalorder %s23, %s39
    %p41 = scmp.eq.s32.totalorder %s15, 0
    %p42 = por %p40, %p41
    %s44 = sadd.s32 %s43, 1
    %p47 = scmp.eq.s32.totalorder %s9, 1
    %p48 = scmp.ne.s32.totalorder %s43, %s45
    %p49 = scmp.eq.s32.totalorder %s9, 0
    %p50 = por %p48, %p49
    %p51 = scmp.ne.s32.totalorder %s43, %s45
    %p52 = scmp.eq.s32.totalorder %s14, 1
    %p53 = por %p51, %p52
    %p54 = scmp.ne.s32.totalorder %s45, %s46
    %p55 = scmp.eq.s32.totalorder %s14, 0
    %p56 = por %p54, %p55
    %p57 = scmp.ne.s32.totalorder %s45, %s46
    %p58 = scmp.eq.s32.totalorder %s15, 1
    %p59 = por %p57, %p58
    %p61 = scmp.ne.s32.totalorder %s46, %s60
    %p62 = scmp.eq.s32.totalorder %s15, 0
    %p63 = por %p61, %p62
    %s65 = sadd.s32 %s64, 1
    %p68 = scmp.eq.s32.totalorder %s9, 1
    %p69 = scmp.ne.s32.totalorder %s64, %s66
    %p70 = scmp.eq.s32.totalorder %s9, 0
    %p71 = por %p69, %p70
    %p72 = scmp.ne.s32.totalorder %s64, %s66
    %p73 = scmp.eq.s32.totalorder %s14, 1
    %p74 = por %p72, %p73
    %p75 = scmp.ne.s32.totalorder %s66, %s67
    %p76 = scmp.eq.s32.totalorder %s14, 0
    %p77 = por %p75, %p76
    %p78 = scmp.ne.s32.totalorder %s66, %s67
    %p79 = scmp.eq.s32.totalorder %s15, 1
    %p80 = por %p78, %p79
    %p82 = scmp.ne.s32.totalorder %s67, %s81
    %p83 = scmp.eq.s32.totalorder %s15, 0
    %p84 = por %p82, %p83
    %s85 = ssub.s32 %s9, %s16
    %p86 = scmp.eq.s32.totalorder %s85, 0
    %s88 = sadd.s32 %s87, 1
    %s89 = scalar_select %p86, %s87, %s88
    %p92 = pneg %p86
    %p93 = scmp.eq.s32.totalorder %s9, 1
    %p94 = por %p92, %p93
    %p95 = scmp.ne.s32.totalorder %s87, %s90
    %p96 = scmp.eq.s32.totalorder %s9, 0
    %p97 = por %p95, %p96
    %p98 = scmp.ne.s32.totalorder %s87, %s90
    %p99 = scmp.eq.s32.totalorder %s14, 1
    %p100 = por %p98, %p99
    %p101 = scmp.ne.s32.totalorder %s90, %s91
    %p102 = scmp.eq.s32.totalorder %s14, 0
    %p103 = por %p101, %p102
    %p104 = scmp.ne.s32.totalorder %s90, %s91
    %p105 = scmp.eq.s32.totalorder %s15, 1
    %p106 = por %p104, %p105
    %p108 = scmp.ne.s32.totalorder %s91, %s107
    %p109 = scmp.eq.s32.totalorder %s15, 0
    %p110 = por %p108, %p109
    %p111 = scmp.le.s32.totalorder 1, %s9
    %p112 = scmp.lt.s32.totalorder %s9, 3
    %p113 = pnand %p111, %p112
    %p114 = pneg %p113
    // Predicated region
    $region9: #{patch_discriminator_forward.5} parent=5 // pred_check
      _
    $region10: #{patch_discriminator_forward.5} parent=5 // pred_check_branch
      %116 = sbr.rel (%p113) target = $region12
    $region11: #{patch_discriminator_forward.5} parent=5 // pred_region
      %s117 = ssub.s32 %s9, 1
      // Predicated region
      $region13: #{patch_discriminator_forward.5} parent=11 // pred_check
        %p118 = pneg %p56
      $region14: #{patch_discriminator_forward.5} parent=11 // pred_check_branch
        %120 = sbr.rel (%p118) target = $region16
      $region15: #{patch_discriminator_forward.5} parent=11 // pred_region
        _
      $region16: #{patch_discriminator_forward.5} parent=11 // pred_fallthru
        _
      // Predicated region
      $region17: #{patch_discriminator_forward.5} parent=11 // pred_check
        %p121 = pneg %p77
      $region18: #{patch_discriminator_forward.5} parent=11 // pred_check_branch
        %123 = sbr.rel (%p121) target = $region20
      $region19: #{patch_discriminator_forward.5} parent=11 // pred_region
        _
      $region20: #{patch_discriminator_forward.5} parent=11 // pred_fallthru
        _
    $region12: #{patch_discriminator_forward.5} parent=5 // pred_fallthru
      _
    %p124 = scmp.lt.s32.totalorder %s9, 2
    // Predicated region
    $region21: #{patch_discriminator_forward.5} parent=5 // pred_check
      %p125 = pneg %p124
    $region22: #{patch_discriminator_forward.5} parent=5 // pred_check_branch
      %127 = sbr.rel (%p125) target = $region24
    $region23: #{patch_discriminator_forward.5} parent=5 // pred_region
      // Predicated region
      $region25: #{patch_discriminator_forward.5} parent=23 // pred_check
        %p128 = pneg %p29
      $region26: #{patch_discriminator_forward.5} parent=23 // pred_check_branch
        %130 = sbr.rel (%p128) target = $region28
      $region27: #{patch_discriminator_forward.5} parent=23 // pred_region
        %p131 = scmp.lt.s32.totalorder %s9, 1
        %s132 = scalar_select %p131, %s9, 1
        %s133 = smul.addr %s132, 32
        %s134 = smul.addr %s133, 4
        %s135 = scalar_lea.vmem %s0, %s134
      $region28: #{patch_discriminator_forward.5} parent=23 // pred_fallthru
        _
    $region24: #{patch_discriminator_forward.5} parent=5 // pred_fallthru
      _
    %p136 = scmp.le.s32.totalorder 1, %s9
    %p137 = scmp.lt.s32.totalorder %s9, 3
    %p138 = pnand %p136, %p137
    %p139 = pneg %p138
    // Predicated region
    $region29: #{patch_discriminator_forward.5} parent=5 // pred_check
      _
    $region30: #{patch_discriminator_forward.5} parent=5 // pred_check_branch
      %141 = sbr.rel (%p138) target = $region32
    $region31: #{patch_discriminator_forward.5} parent=5 // pred_region
      %s142 = ssub.s32 %s9, 1
      %p143 = scmp.lt.s32.totalorder %s14, 1
      %s144 = scalar_select %p143, %s14, 1
      %s145 = smul.addr %s144, 32
      %s146 = smul.addr %s145, 4
      %s147 = scalar_lea.vmem %s0, %s146
      %p148 = pneg %p35
      %p149 = pneg %p32
      %p150 = pneg %p56
      %p151 = pneg %p53
      %p152 = pneg %p77
      %p153 = pneg %p74
      %p154 = pneg %p103
      %p155 = pneg %p100
      %p156 = scmp.lt.s32.totalorder %s14, 1
      %s157 = scalar_select %p156, %s14, 1
      %s158 = smul.addr %s157, 32
      %s159 = smul.addr %s158, 4
      %s160 = scalar_lea.vmem %s3, %s159
      %p161 = scmp.lt.s32.totalorder %s14, 1
      %s162 = scalar_select %p161, %s14, 1
      %s163 = smul.addr %s162, 32
      %s164 = smul.addr %s163, 4
      %s165 = scalar_lea.vmem %s0, %s164
      %p166 = scmp.lt.s32.totalorder %s14, 1
      %s167 = scalar_select %p166, %s14, 1
      %s168 = smul.addr %s167, 32
      %s169 = smul.addr %s168, 4
      %s170 = scalar_lea.vmem %s3, %s169
      %v172 = vld [vmem:[%s165] sm:$0xf]
      %v173 = vld [vmem:[%s165 + $0x4] sm:$0xf]
      %v174 = vld [vmem:[%s165 + $0x8] sm:$0xf]
      %v175 = vld [vmem:[%s165 + $0xc] sm:$0xf]
      %v176 = vld [vmem:[%s165 + $0x10] sm:$0xf]
      %v177 = vld [vmem:[%s165 + $0x14] sm:$0xf]
      %v178 = vld [vmem:[%s165 + $0x18] sm:$0xf]
      %v179 = vld [vmem:[%s165 + $0x1c] sm:$0xf]
      %v180 = vld [vmem:[%s165 + $0x20] sm:$0xf]
      %v181 = vld [vmem:[%s165 + $0x24] sm:$0xf]
      %v182 = vld [vmem:[%s165 + $0x28] sm:$0xf]
      %v183 = vld [vmem:[%s165 + $0x2c] sm:$0xf]
      %v184 = vld [vmem:[%s165 + $0x30] sm:$0xf]
      %v185 = vld [vmem:[%s165 + $0x34] sm:$0xf]
      %v186 = vld [vmem:[%s165 + $0x38] sm:$0xf]
      %v187 = vld [vmem:[%s165 + $0x3c] sm:$0xf]
      %v188 = vld [vmem:[%s165 + $0x40] sm:$0xf]
      %v189 = vld [vmem:[%s165 + $0x44] sm:$0xf]
      %v190 = vld [vmem:[%s165 + $0x48] sm:$0xf]
      %v191 = vld [vmem:[%s165 + $0x4c] sm:$0xf]
      %v192 = vld [vmem:[%s165 + $0x50] sm:$0xf]
      %v193 = vld [vmem:[%s165 + $0x54] sm:$0xf]
      %v194 = vld [vmem:[%s165 + $0x58] sm:$0xf]
      %v195 = vld [vmem:[%s165 + $0x5c] sm:$0xf]
      %v196 = vld [vmem:[%s165 + $0x60] sm:$0xf]
      %v197 = vld [vmem:[%s165 + $0x64] sm:$0xf]
      %v198 = vld [vmem:[%s165 + $0x68] sm:$0xf]
      %v199 = vld [vmem:[%s165 + $0x6c] sm:$0xf]
      %v200 = vld [vmem:[%s165 + $0x70] sm:$0xf]
      %v201 = vld [vmem:[%s165 + $0x74] sm:$0xf]
      %v202 = vld [vmem:[%s165 + $0x78] sm:$0xf]
      %v203 = vld [vmem:[%s165 + $0x7c] sm:$0xf]
      %v204 = vld [vmem:[%s1] sm:$0xf]
      %v205 = vld [vmem:[%s1 + $0x4] sm:$0xf]
      %v206 = vld [vmem:[%s1 + $0x8] sm:$0xf]
      %v207 = vld [vmem:[%s1 + $0xc] sm:$0xf]
      %v208 = vld [vmem:[%s1 + $0x10] sm:$0xf]
      %v209 = vld [vmem:[%s1 + $0x14] sm:$0xf]
      %v210 = vld [vmem:[%s1 + $0x18] sm:$0xf]
      %v211 = vld [vmem:[%s1 + $0x1c] sm:$0xf]
      %v212 = vld [vmem:[%s1 + $0x20] sm:$0xf]
      %v213 = vld [vmem:[%s1 + $0x24] sm:$0xf]
      %v214 = vld [vmem:[%s1 + $0x28] sm:$0xf]
      %v215 = vld [vmem:[%s1 + $0x2c] sm:$0xf]
      %v216 = vld [vmem:[%s1 + $0x30] sm:$0xf]
      %v217 = vld [vmem:[%s1 + $0x34] sm:$0xf]
      %v218 = vld [vmem:[%s1 + $0x38] sm:$0xf]
      %v219 = vld [vmem:[%s1 + $0x3c] sm:$0xf]
      %v220 = vld [vmem:[%s2] sm:$0x1]
      %v222 = vlaneseq
      %v223 = vshrl.u32 %v222, 7
      %v224 = vsub.s32 0, %v223
      %v225 = vrot.slane %v220, %v224
      %v259 = vunpack.c.l.b16 %v172
      %v260 = vunpack.c.l.b16 %v173
      %v261 = vunpack.c.l.b16 %v174
      %v262 = vunpack.c.l.b16 %v175
      %v263 = vunpack.c.l.b16 %v176
      %v264 = vunpack.c.l.b16 %v177
      %v265 = vunpack.c.l.b16 %v178
      %v266 = vunpack.c.l.b16 %v179
      %v267 = vunpack.c.l.b16 %v180
      %v268 = vunpack.c.l.b16 %v181
      %v269 = vunpack.c.l.b16 %v182
      %v270 = vunpack.c.l.b16 %v183
      %v271 = vunpack.c.l.b16 %v184
      %v272 = vunpack.c.l.b16 %v185
      %v273 = vunpack.c.l.b16 %v186
      %v274 = vunpack.c.l.b16 %v187
      %v275 = vunpack.c.l.b16 %v188
      %v276 = vunpack.c.l.b16 %v189
      %v277 = vunpack.c.l.b16 %v190
      %v278 = vunpack.c.l.b16 %v191
      %v279 = vunpack.c.l.b16 %v192
      %v280 = vunpack.c.l.b16 %v193
      %v281 = vunpack.c.l.b16 %v194
      %v282 = vunpack.c.l.b16 %v195
      %v283 = vunpack.c.l.b16 %v196
      %v284 = vunpack.c.l.b16 %v197
      %v285 = vunpack.c.l.b16 %v198
      %v286 = vunpack.c.l.b16 %v199
      %v287 = vunpack.c.l.b16 %v200
      %v288 = vunpack.c.l.b16 %v201
      %v289 = vunpack.c.l.b16 %v202
      %v290 = vunpack.c.l.b16 %v203
      %v291 = vpack.c.b16 %v260, %v259
      %v292 = vpack.c.b16 %v262, %v261
      %v293 = vpack.c.b16 %v264, %v263
      %v294 = vpack.c.b16 %v266, %v265
      %v295 = vpack.c.b16 %v268, %v267
      %v296 = vpack.c.b16 %v270, %v269
      %v297 = vpack.c.b16 %v272, %v271
      %v298 = vpack.c.b16 %v274, %v273
      %v299 = vpack.c.b16 %v276, %v275
      %v300 = vpack.c.b16 %v278, %v277
      %v301 = vpack.c.b16 %v280, %v279
      %v302 = vpack.c.b16 %v282, %v281
      %v303 = vpack.c.b16 %v284, %v283
      %v304 = vpack.c.b16 %v286, %v285
      %v305 = vpack.c.b16 %v288, %v287
      %v306 = vpack.c.b16 %v290, %v289
      %v339 = vunpack.c.l.b16 %v204
      %v340 = vunpack.c.l.b16 %v205
      %v341 = vunpack.c.l.b16 %v206
      %v342 = vunpack.c.l.b16 %v207
      %v343 = vunpack.c.l.b16 %v208
      %v344 = vunpack.c.l.b16 %v209
      %v345 = vunpack.c.l.b16 %v210
      %v346 = vunpack.c.l.b16 %v211
      %v347 = vunpack.c.l.b16 %v212
      %v348 = vunpack.c.l.b16 %v213
      %v349 = vunpack.c.l.b16 %v214
      %v350 = vunpack.c.l.b16 %v215
      %v351 = vunpack.c.l.b16 %v216
      %v352 = vunpack.c.l.b16 %v217
      %v353 = vunpack.c.l.b16 %v218
      %v354 = vunpack.c.l.b16 %v219
      %v355 = vpack.c.b16 %v340, %v339
      %v356 = vpack.c.b16 %v342, %v341
      %v357 = vpack.c.b16 %v344, %v343
      %v358 = vpack.c.b16 %v346, %v345
      %v359 = vpack.c.b16 %v348, %v347
      %v360 = vpack.c.b16 %v350, %v349
      %v361 = vpack.c.b16 %v352, %v351
      %v362 = vpack.c.b16 %v354, %v353
      %371 = vmatprep.subr.bf16.mxu0 0
      %372 = vmatpush1.bf16.msra.mxu0 %v355
      %373 = vmatprep.subr.bf16.mxu0 0
      %374 = vmatpush1.bf16.msra.mxu0 %v356
      %375 = vmatprep.subr.bf16.mxu0 0
      %376 = vmatpush1.bf16.msra.mxu0 %v357
      %377 = vmatprep.subr.bf16.mxu0 0
      %378 = vmatpush1.bf16.msra.mxu0 %v358
      %379 = vmatprep.subr.bf16.mxu0 0
      %380 = vmatpush1.bf16.msra.mxu0 %v359
      %381 = vmatprep.subr.bf16.mxu0 0
      %382 = vmatpush1.bf16.msra.mxu0 %v360
      %383 = vmatprep.subr.bf16.mxu0 0
      %384 = vmatpush1.bf16.msra.mxu0 %v361
      %385 = vmatprep.subr.bf16.mxu0 0
      %386 = vmatpush1.bf16.msra.mxu0 %v362
      %387 = vmatprep.subr.bf16.mxu0 0
      %388 = vmatpush1.bf16.msra.mxu0 0
      %389 = vmatprep.subr.bf16.mxu0 0
      %390 = vmatpush1.bf16.msra.mxu0 0
      %391 = vmatprep.subr.bf16.mxu0 0
      %392 = vmatpush1.bf16.msra.mxu0 0
      %393 = vmatprep.subr.bf16.mxu0 0
      %394 = vmatpush1.bf16.msra.mxu0 0
      %395 = vmatprep.subr.bf16.mxu0 0
      %396 = vmatpush1.bf16.msra.mxu0 0
      %397 = vmatprep.subr.bf16.mxu0 0
      %398 = vmatpush1.bf16.msra.mxu0 0
      %399 = vmatprep.subr.bf16.mxu0 0
      %400 = vmatpush1.bf16.msra.mxu0 0
      %401 = vmatprep.subr.bf16.mxu0 0
      %402 = vmatpush1.bf16.msra.mxu0 0
      %403 = vmatprep.mubr.bf16.mxu0 0
      %404 = vmatmul.mubr.bf16.gmra.mrb[0].mxu0 %v291
      %v405 = vpop.f32.mrb[0].mxu0
      %v406 = vadd.f32 %v225, %v405
      %v407 = vpop.f32.mrb[0].mxu0
      %v408 = vpop.f32.mrb[0].mxu0
      %v409 = vadd.f32 %v225, %v408
      %v410 = vpop.f32.mrb[0].mxu0
      %411 = vmatprep.mubr.bf16.mxu0 0
      %412 = vmatmul.mubr.bf16.gmra.mrb[0].mxu0 %v292
      %v413 = vpop.f32.mrb[0].mxu0
      %v414 = vadd.f32 %v225, %v413
      %v415 = vpop.f32.mrb[0].mxu0
      %v416 = vpop.f32.mrb[0].mxu0
      %v417 = vadd.f32 %v225, %v416
      %v418 = vpop.f32.mrb[0].mxu0
      %419 = vmatprep.mubr.bf16.mxu0 0
      %420 = vmatmul.mubr.bf16.gmra.mrb[0].mxu0 %v293
      %v421 = vpop.f32.mrb[0].mxu0
      %v422 = vadd.f32 %v225, %v421
      %v423 = vpop.f32.mrb[0].mxu0
      %v424 = vpop.f32.mrb[0].mxu0
      %v425 = vadd.f32 %v225, %v424
      %v426 = vpop.f32.mrb[0].mxu0
      %427 = vmatprep.mubr.bf16.mxu0 0
      %428 = vmatmul.mubr.bf16.gmra.mrb[0].mxu0 %v294
      %v429 = vpop.f32.mrb[0].mxu0
      %v430 = vadd.f32 %v225, %v429
      %v431 = vpop.f32.mrb[0].mxu0
      %v432 = vpop.f32.mrb[0].mxu0
      %v433 = vadd.f32 %v225, %v432
      %v434 = vpop.f32.mrb[0].mxu0
      %435 = vmatprep.mubr.bf16.mxu0 0
      %436 = vmatmul.mubr.bf16.gmra.mrb[0].mxu0 %v295
      %v437 = vpop.f32.mrb[0].mxu0
      %v438 = vadd.f32 %v225, %v437
      %v439 = vpop.f32.mrb[0].mxu0
      %v440 = vpop.f32.mrb[0].mxu0
      %v441 = vadd.f32 %v225, %v440
      %v442 = vpop.f32.mrb[0].mxu0
      %443 = vmatprep.mubr.bf16.mxu0 0
      %444 = vmatmul.mubr.bf16.gmra.mrb[0].mxu0 %v296
      %v445 = vpop.f32.mrb[0].mxu0
      %v446 = vadd.f32 %v225, %v445
      %v447 = vpop.f32.mrb[0].mxu0
      %v448 = vpop.f32.mrb[0].mxu0
      %v449 = vadd.f32 %v225, %v448
      %v450 = vpop.f32.mrb[0].mxu0
      %451 = vmatprep.mubr.bf16.mxu0 0
      %452 = vmatmul.mubr.bf16.gmra.mrb[0].mxu0 %v297
      %v453 = vpop.f32.mrb[0].mxu0
      %v454 = vadd.f32 %v225, %v453
      %v455 = vpop.f32.mrb[0].mxu0
      %v456 = vpop.f32.mrb[0].mxu0
      %v457 = vadd.f32 %v225, %v456
      %v458 = vpop.f32.mrb[0].mxu0
      %459 = vmatprep.mubr.bf16.mxu0 0
      %460 = vmatmul.mubr.bf16.gmra.mrb[0].mxu0 %v298
      %v461 = vpop.f32.mrb[0].mxu0
      %v462 = vadd.f32 %v225, %v461
      %v463 = vpop.f32.mrb[0].mxu0
      %v464 = vpop.f32.mrb[0].mxu0
      %v465 = vadd.f32 %v225, %v464
      %v466 = vpop.f32.mrb[0].mxu0
      %467 = vmatprep.mubr.bf16.mxu0 0
      %468 = vmatmul.mubr.bf16.gmra.mrb[0].mxu0 %v299
      %v469 = vpop.f32.mrb[0].mxu0
      %v470 = vadd.f32 %v225, %v469
      %v471 = vpop.f32.mrb[0].mxu0
      %v472 = vpop.f32.mrb[0].mxu0
      %v473 = vadd.f32 %v225, %v472
      %v474 = vpop.f32.mrb[0].mxu0
      %475 = vmatprep.mubr.bf16.mxu0 0
      %476 = vmatmul.mubr.bf16.gmra.mrb[0].mxu0 %v300
      %v477 = vpop.f32.mrb[0].mxu0
      %v478 = vadd.f32 %v225, %v477
      %v479 = vpop.f32.mrb[0].mxu0
      %v480 = vpop.f32.mrb[0].mxu0
      %v481 = vadd.f32 %v225, %v480
      %v482 = vpop.f32.mrb[0].mxu0
      %483 = vmatprep.mubr.bf16.mxu0 0
      %484 = vmatmul.mubr.bf16.gmra.mrb[0].mxu0 %v301
      %v485 = vpop.f32.mrb[0].mxu0
      %v486 = vadd.f32 %v225, %v485
      %v487 = vpop.f32.mrb[0].mxu0
      %v488 = vpop.f32.mrb[0].mxu0
      %v489 = vadd.f32 %v225, %v488
      %v490 = vpop.f32.mrb[0].mxu0
      %491 = vmatprep.mubr.bf16.mxu0 0
      %492 = vmatmul.mubr.bf16.gmra.mrb[0].mxu0 %v302
      %v493 = vpop.f32.mrb[0].mxu0
      %v494 = vadd.f32 %v225, %v493
      %v495 = vpop.f32.mrb[0].mxu0
      %v496 = vpop.f32.mrb[0].mxu0
      %v497 = vadd.f32 %v225, %v496
      %v498 = vpop.f32.mrb[0].mxu0
      %499 = vmatprep.mubr.bf16.mxu0 0
      %500 = vmatmul.mubr.bf16.gmra.mrb[0].mxu0 %v303
      %v501 = vpop.f32.mrb[0].mxu0
      %v502 = vadd.f32 %v225, %v501
      %v503 = vpop.f32.mrb[0].mxu0
      %v504 = vpop.f32.mrb[0].mxu0
      %v505 = vadd.f32 %v225, %v504
      %v506 = vpop.f32.mrb[0].mxu0
      %507 = vmatprep.mubr.bf16.mxu0 0
      %508 = vmatmul.mubr.bf16.gmra.mrb[0].mxu0 %v304
      %v509 = vpop.f32.mrb[0].mxu0
      %v510 = vadd.f32 %v225, %v509
      %v511 = vpop.f32.mrb[0].mxu0
      %v512 = vpop.f32.mrb[0].mxu0
      %v513 = vadd.f32 %v225, %v512
      %v514 = vpop.f32.mrb[0].mxu0
      %515 = vmatprep.mubr.bf16.mxu0 0
      %516 = vmatmul.mubr.bf16.gmra.mrb[0].mxu0 %v305
      %v517 = vpop.f32.mrb[0].mxu0
      %v518 = vadd.f32 %v225, %v517
      %v519 = vpop.f32.mrb[0].mxu0
      %v520 = vpop.f32.mrb[0].mxu0
      %v521 = vadd.f32 %v225, %v520
      %v522 = vpop.f32.mrb[0].mxu0
      %523 = vmatprep.mubr.bf16.mxu0 0
      %524 = vmatmul.mubr.bf16.gmra.mrb[0].mxu0 %v306
      %v525 = vpop.f32.mrb[0].mxu0
      %v526 = vadd.f32 %v225, %v525
      %v527 = vpop.f32.mrb[0].mxu0
      %v528 = vpop.f32.mrb[0].mxu0
      %v529 = vadd.f32 %v225, %v528
      %v530 = vpop.f32.mrb[0].mxu0
      %531 = vdwg.mxu0
      %vm532 = vcmp.ge.f32.partialorder %v406, 0.0
      %vm533 = vcmp.ge.f32.partialorder %v409, 0.0
      %vm534 = vcmp.ge.f32.partialorder %v414, 0.0
      %vm535 = vcmp.ge.f32.partialorder %v417, 0.0
      %vm536 = vcmp.ge.f32.partialorder %v422, 0.0
      %vm537 = vcmp.ge.f32.partialorder %v425, 0.0
      %vm538 = vcmp.ge.f32.partialorder %v430, 0.0
      %vm539 = vcmp.ge.f32.partialorder %v433, 0.0
      %vm540 = vcmp.ge.f32.partialorder %v438, 0.0
      %vm541 = vcmp.ge.f32.partialorder %v441, 0.0
      %vm542 = vcmp.ge.f32.partialorder %v446, 0.0
      %vm543 = vcmp.ge.f32.partialorder %v449, 0.0
      %vm544 = vcmp.ge.f32.partialorder %v454, 0.0
      %vm545 = vcmp.ge.f32.partialorder %v457, 0.0
      %vm546 = vcmp.ge.f32.partialorder %v462, 0.0
      %vm547 = vcmp.ge.f32.partialorder %v465, 0.0
      %vm548 = vcmp.ge.f32.partialorder %v470, 0.0
      %vm549 = vcmp.ge.f32.partialorder %v473, 0.0
      %vm550 = vcmp.ge.f32.partialorder %v478, 0.0
      %vm551 = vcmp.ge.f32.partialorder %v481, 0.0
      %vm552 = vcmp.ge.f32.partialorder %v486, 0.0
      %vm553 = vcmp.ge.f32.partialorder %v489, 0.0
      %vm554 = vcmp.ge.f32.partialorder %v494, 0.0
      %vm555 = vcmp.ge.f32.partialorder %v497, 0.0
      %vm556 = vcmp.ge.f32.partialorder %v502, 0.0
      %vm557 = vcmp.ge.f32.partialorder %v505, 0.0
      %vm558 = vcmp.ge.f32.partialorder %v510, 0.0
      %vm559 = vcmp.ge.f32.partialorder %v513, 0.0
      %vm560 = vcmp.ge.f32.partialorder %v518, 0.0
      %vm561 = vcmp.ge.f32.partialorder %v521, 0.0
      %vm562 = vcmp.ge.f32.partialorder %v526, 0.0
      %vm563 = vcmp.ge.f32.partialorder %v529, 0.0
      %v564 = vmul.f32 %v406, 0.2
      %v565 = vmul.f32 %v409, 0.2
      %v566 = vmul.f32 %v414, 0.2
      %v567 = vmul.f32 %v417, 0.2
      %v568 = vmul.f32 %v422, 0.2
      %v569 = vmul.f32 %v425, 0.2
      %v570 = vmul.f32 %v430, 0.2
      %v571 = vmul.f32 %v433, 0.2
      %v572 = vmul.f32 %v438, 0.2
      %v573 = vmul.f32 %v441, 0.2
      %v574 = vmul.f32 %v446, 0.2
      %v575 = vmul.f32 %v449, 0.2
      %v576 = vmul.f32 %v454, 0.2
      %v577 = vmul.f32 %v457, 0.2
      %v578 = vmul.f32 %v462, 0.2
      %v579 = vmul.f32 %v465, 0.2
      %v580 = vmul.f32 %v470, 0.2
      %v581 = vmul.f32 %v473, 0.2
      %v582 = vmul.f32 %v478, 0.2
      %v583 = vmul.f32 %v481, 0.2
      %v584 = vmul.f32 %v486, 0.2
      %v585 = vmul.f32 %v489, 0.2
      %v586 = vmul.f32 %v494, 0.2
      %v587 = vmul.f32 %v497, 0.2
      %v588 = vmul.f32 %v502, 0.2
      %v589 = vmul.f32 %v505, 0.2
      %v590 = vmul.f32 %v510, 0.2
      %v591 = vmul.f32 %v513, 0.2
      %v592 = vmul.f32 %v518, 0.2
      %v593 = vmul.f32 %v521, 0.2
      %v594 = vmul.f32 %v526, 0.2
      %v595 = vmul.f32 %v529, 0.2
      %v596 = vsel %vm532, %v406, %v564
      %v597 = vsel %vm533, %v409, %v565
      %v598 = vsel %vm534, %v414, %v566
      %v599 = vsel %vm535, %v417, %v567
      %v600 = vsel %vm536, %v422, %v568
      %v601 = vsel %vm537, %v425, %v569
      %v602 = vsel %vm538, %v430, %v570
      %v603 = vsel %vm539, %v433, %v571
      %v604 = vsel %vm540, %v438, %v572
      %v605 = vsel %vm541, %v441, %v573
      %v606 = vsel %vm542, %v446, %v574
      %v607 = vsel %vm543, %v449, %v575
      %v608 = vsel %vm544, %v454, %v576
      %v609 = vsel %vm545, %v457, %v577
      %v610 = vsel %vm546, %v462, %v578
      %v611 = vsel %vm547, %v465, %v579
      %v612 = vsel %vm548, %v470, %v580
      %v613 = vsel %vm549, %v473, %v581
      %v614 = vsel %vm550, %v478, %v582
      %v615 = vsel %vm551, %v481, %v583
      %v616 = vsel %vm552, %v486, %v584
      %v617 = vsel %vm553, %v489, %v585
      %v618 = vsel %vm554, %v494, %v586
      %v619 = vsel %vm555, %v497, %v587
      %v620 = vsel %vm556, %v502, %v588
      %v621 = vsel %vm557, %v505, %v589
      %v622 = vsel %vm558, %v510, %v590
      %v623 = vsel %vm559, %v513, %v591
      %v624 = vsel %vm560, %v518, %v592
      %v625 = vsel %vm561, %v521, %v593
      %v626 = vsel %vm562, %v526, %v594
      %v627 = vsel %vm563, %v529, %v595
      %v628 = vpack.c.bf16 %v597, %v596
      %v629 = vpack.c.bf16 %v599, %v598
      %v630 = vpack.c.bf16 %v601, %v600
      %v631 = vpack.c.bf16 %v603, %v602
      %v632 = vpack.c.bf16 %v605, %v604
      %v633 = vpack.c.bf16 %v607, %v606
      %v634 = vpack.c.bf16 %v609, %v608
      %v635 = vpack.c.bf16 %v611, %v610
      %v636 = vpack.c.bf16 %v613, %v612
      %v637 = vpack.c.bf16 %v615, %v614
      %v638 = vpack.c.bf16 %v617, %v616
      %v639 = vpack.c.bf16 %v619, %v618
      %v640 = vpack.c.bf16 %v621, %v620
      %v641 = vpack.c.bf16 %v623, %v622
      %v642 = vpack.c.bf16 %v625, %v624
      %v643 = vpack.c.bf16 %v627, %v626
      %v660 = vunpack.c.l.b16 %v628
      %v661 = vunpack.c.h.b16 %v628
      %v662 = vunpack.c.l.b16 %v629
      %v663 = vunpack.c.h.b16 %v629
      %v664 = vunpack.c.l.b16 %v630
      %v665 = vunpack.c.h.b16 %v630
      %v666 = vunpack.c.l.b16 %v631
      %v667 = vunpack.c.h.b16 %v631
      %v668 = vunpack.c.l.b16 %v632
      %v669 = vunpack.c.h.b16 %v632
      %v670 = vunpack.c.l.b16 %v633
      %v671 = vunpack.c.h.b16 %v633
      %v672 = vunpack.c.l.b16 %v634
      %v673 = vunpack.c.h.b16 %v634
      %v674 = vunpack.c.l.b16 %v635
      %v675 = vunpack.c.h.b16 %v635
      %v676 = vunpack.c.l.b16 %v636
      %v677 = vunpack.c.h.b16 %v636
      %v678 = vunpack.c.l.b16 %v637
      %v679 = vunpack.c.h.b16 %v637
      %v680 = vunpack.c.l.b16 %v638
      %v681 = vunpack.c.h.b16 %v638
      %v682 = vunpack.c.l.b16 %v639
      %v683 = vunpack.c.h.b16 %v639
      %v684 = vunpack.c.l.b16 %v640
      %v685 = vunpack.c.h.b16 %v640
      %v686 = vunpack.c.l.b16 %v641
      %v687 = vunpack.c.h.b16 %v641
      %v688 = vunpack.c.l.b16 %v642
      %v689 = vunpack.c.h.b16 %v642
      %v690 = vunpack.c.l.b16 %v643
      %v691 = vunpack.c.h.b16 %v643
      %v692 = vpack.c.b16 %v660, %v660
      %v693 = vpack.c.b16 %v661, %v661
      %v694 = vpack.c.b16 %v662, %v662
      %v695 = vpack.c.b16 %v663, %v663
      %v696 = vpack.c.b16 %v664, %v664
      %v697 = vpack.c.b16 %v665, %v665
      %v698 = vpack.c.b16 %v666, %v666
      %v699 = vpack.c.b16 %v667, %v667
      %v700 = vpack.c.b16 %v668, %v668
      %v701 = vpack.c.b16 %v669, %v669
      %v702 = vpack.c.b16 %v670, %v670
      %v703 = vpack.c.b16 %v671, %v671
      %v704 = vpack.c.b16 %v672, %v672
      %v705 = vpack.c.b16 %v673, %v673
      %v706 = vpack.c.b16 %v674, %v674
      %v707 = vpack.c.b16 %v675, %v675
      %v708 = vpack.c.b16 %v676, %v676
      %v709 = vpack.c.b16 %v677, %v677
      %v710 = vpack.c.b16 %v678, %v678
      %v711 = vpack.c.b16 %v679, %v679
      %v712 = vpack.c.b16 %v680, %v680
      %v713 = vpack.c.b16 %v681, %v681
      %v714 = vpack.c.b16 %v682, %v682
      %v715 = vpack.c.b16 %v683, %v683
      %v716 = vpack.c.b16 %v684, %v684
      %v717 = vpack.c.b16 %v685, %v685
      %v718 = vpack.c.b16 %v686, %v686
      %v719 = vpack.c.b16 %v687, %v687
      %v720 = vpack.c.b16 %v688, %v688
      %v721 = vpack.c.b16 %v689, %v689
      %v722 = vpack.c.b16 %v690, %v690
      %v723 = vpack.c.b16 %v691, %v691
      %756 = vst [vmem:[%s170] sm:$0xf] %v692
      %757 = vst [vmem:[%s170 + $0x4] sm:$0xf] %v693
      %758 = vst [vmem:[%s170 + $0x8] sm:$0xf] %v694
      %759 = vst [vmem:[%s170 + $0xc] sm:$0xf] %v695
      %760 = vst [vmem:[%s170 + $0x10] sm:$0xf] %v696
      %761 = vst [vmem:[%s170 + $0x14] sm:$0xf] %v697
      %762 = vst [vmem:[%s170 + $0x18] sm:$0xf] %v698
      %763 = vst [vmem:[%s170 + $0x1c] sm:$0xf] %v699
      %764 = vst [vmem:[%s170 + $0x20] sm:$0xf] %v700
      %765 = vst [vmem:[%s170 + $0x24] sm:$0xf] %v701
      %766 = vst [vmem:[%s170 + $0x28] sm:$0xf] %v702
      %767 = vst [vmem:[%s170 + $0x2c] sm:$0xf] %v703
      %768 = vst [vmem:[%s170 + $0x30] sm:$0xf] %v704
      %769 = vst [vmem:[%s170 + $0x34] sm:$0xf] %v705
      %770 = vst [vmem:[%s170 + $0x38] sm:$0xf] %v706
      %771 = vst [vmem:[%s170 + $0x3c] sm:$0xf] %v707
      %772 = vst [vmem:[%s170 + $0x40] sm:$0xf] %v708
      %773 = vst [vmem:[%s170 + $0x44] sm:$0xf] %v709
      %774 = vst [vmem:[%s170 + $0x48] sm:$0xf] %v710
      %775 = vst [vmem:[%s170 + $0x4c] sm:$0xf] %v711
      %776 = vst [vmem:[%s170 + $0x50] sm:$0xf] %v712
      %777 = vst [vmem:[%s170 + $0x54] sm:$0xf] %v713
      %778 = vst [vmem:[%s170 + $0x58] sm:$0xf] %v714
      %779 = vst [vmem:[%s170 + $0x5c] sm:$0xf] %v715
      %780 = vst [vmem:[%s170 + $0x60] sm:$0xf] %v716
      %781 = vst [vmem:[%s170 + $0x64] sm:$0xf] %v717
      %782 = vst [vmem:[%s170 + $0x68] sm:$0xf] %v718
      %783 = vst [vmem:[%s170 + $0x6c] sm:$0xf] %v719
      %784 = vst [vmem:[%s170 + $0x70] sm:$0xf] %v720
      %785 = vst [vmem:[%s170 + $0x74] sm:$0xf] %v721
      %786 = vst [vmem:[%s170 + $0x78] sm:$0xf] %v722
      %787 = vst [vmem:[%s170 + $0x7c] sm:$0xf] %v723
      %p788 = scmp.lt.s32.totalorder %s14, 1
      %s789 = scalar_select %p788, %s14, 1
      %s790 = smul.addr %s789, 32
      %s791 = smul.addr %s790, 4
      %s792 = scalar_lea.vmem %s3, %s791
      // Predicated region
      $region33: #{patch_discriminator_forward.5} parent=31 // pred_check
        %p793 = pneg %p100
      $region34: #{patch_discriminator_forward.5} parent=31 // pred_check_branch
        %795 = sbr.rel (%p793) target = $region36
      $region35: #{patch_discriminator_forward.5} parent=31 // pred_region
        _
      $region36: #{patch_discriminator_forward.5} parent=31 // pred_fallthru
        _
    $region32: #{patch_discriminator_forward.5} parent=5 // pred_fallthru
      _
    %p796 = scmp.le.s32.totalorder 2, %s9
    // Predicated region
    $region37: #{patch_discriminator_forward.5} parent=5 // pred_check
      %p797 = pneg %p796
    $region38: #{patch_discriminator_forward.5} parent=5 // pred_check_branch
      %799 = sbr.rel (%p797) target = $region40
    $region39: #{patch_discriminator_forward.5} parent=5 // pred_region
      %s800 = ssub.s32 %s9, 2
      // Predicated region
      $region41: #{patch_discriminator_forward.5} parent=39 // pred_check
        %p801 = pneg %p106
      $region42: #{patch_discriminator_forward.5} parent=39 // pred_check_branch
        %803 = sbr.rel (%p801) target = $region44
      $region43: #{patch_discriminator_forward.5} parent=39 // pred_region
        %p804 = scmp.lt.s32.totalorder %s15, 1
        %s805 = scalar_select %p804, %s15, 1
        %s806 = smul.addr %s805, 32
        %s807 = smul.addr %s806, 4
        %s808 = scalar_lea.vmem %s3, %s807
      $region44: #{patch_discriminator_forward.5} parent=39 // pred_fallthru
        _
    $region40: #{patch_discriminator_forward.5} parent=5 // pred_fallthru
      _
  $region6: #{patch_discriminator_forward.5} parent=0 // loop_footer
    %s13 = sadd.s32 1, %s9
  $region7: #{patch_discriminator_forward.5} parent=0 // loop_footer_branch
    %8 = sbr.rel target = $region3
  $region8: #{patch_discriminator_forward.5} parent=0 // loop_exit
    _

// kernel: patch_discriminator_forward.6
$region0: #{patch_discriminator_forward.6}
  #allocation0 [shape = 'u32[]', space=smem, size = 0x4, offset = 0x4, fixed_abs, tag = 'smem constant byte address 0x4 - core index']
  #allocation1 [shape = 'u32[144,128]{1,0:T(1,128)}', space=vmem, size = 0x12000, scoped, tag = 'internal scratch']
  %s0 = inlined_call_operand.vmem [shape: bf16[2,64,128], index: 0, kind: input, shape index: {}]
  %s1 = inlined_call_operand.vmem [shape: bf16[128,128], index: 1, kind: input, shape index: {}]
  %s2 = inlined_call_operand.vmem [shape: f32[1,128], index: 2, kind: input, shape index: {}]
  %s3 = inlined_call_operand.vmem [shape: bf16[2,64,128], index: 3, kind: output, shape index: {}]
  %s4 = sld [smem:[#allocation0]]
  $region45: #{patch_discriminator_forward.6} parent=0
    _
  %s6 = ssub.s32 1, %s4
  %s7 = scalar_select 0, %s6, %s4
  loop: start=0, step=1, limit=4
  $region2: #{patch_discriminator_forward.6} parent=0 // loop_pre_header
    _
  $region3: #{patch_discriminator_forward.6} parent=0 // loop_header
    %s9 = sphi 0, %s13
    %p10 = scmp.ge.s32.totalorder %s9, 4
    %s19 = sphi 0, %s21
    %s22 = sphi 0, %s19
    %s23 = sphi 0, %s22
    %s39 = sphi 0, %s23
    %s43 = sphi 0, %s43
    %s45 = sphi 0, %s43
    %s46 = sphi 0, %s45
    %s60 = sphi 0, %s46
    %s64 = sphi 0, %s64
    %s66 = sphi 0, %s64
    %s67 = sphi 0, %s66
    %s81 = sphi 0, %s67
    %s87 = sphi 0, %s89
    %s90 = sphi 0, %s87
    %s91 = sphi 0, %s90
    %s107 = sphi 0, %s91
  $region4: #{patch_discriminator_forward.6} parent=0 // loop_header_branch
    %12 = sbr.rel (%p10) target = $region8
  $region5: #{patch_discriminator_forward.6} parent=0 // loop_body
    %s14 = ssub.s32 %s9, 1
    %s15 = ssub.s32 %s9, 2
    %s16 = sadd.s32 %s9, 1
    %s17 = ssub.s32 %s9, %s16
    %p18 = scmp.eq.s32.totalorder %s17, 0
    %s20 = sadd.s32 %s19, 1
    %s21 = scalar_select %p18, %s19, %s20
    %p24 = pneg %p18
    %p25 = scmp.eq.s32.totalorder %s9, 1
    %p26 = por %p24, %p25
    %p27 = scmp.ne.s32.totalorder %s19, %s22
    %p28 = scmp.eq.s32.totalorder %s9, 0
    %p29 = por %p27, %p28
    %p30 = scmp.ne.s32.totalorder %s19, %s22
    %p31 = scmp.eq.s32.totalorder %s14, 1
    %p32 = por %p30, %p31
    %p33 = scmp.ne.s32.totalorder %s22, %s23
    %p34 = scmp.eq.s32.totalorder %s14, 0
    %p35 = por %p33, %p34
    %p36 = scmp.ne.s32.totalorder %s22, %s23
    %p37 = scmp.eq.s32.totalorder %s15, 1
    %p38 = por %p36, %p37
    %p40 = scmp.ne.s32.totalorder %s23, %s39
    %p41 = scmp.eq.s32.totalorder %s15, 0
    %p42 = por %p40, %p41
    %s44 = sadd.s32 %s43, 1
    %p47 = scmp.eq.s32.totalorder %s9, 1
    %p48 = scmp.ne.s32.totalorder %s43, %s45
    %p49 = scmp.eq.s32.totalorder %s9, 0
    %p50 = por %p48, %p49
    %p51 = scmp.ne.s32.totalorder %s43, %s45
    %p52 = scmp.eq.s32.totalorder %s14, 1
    %p53 = por %p51, %p52
    %p54 = scmp.ne.s32.totalorder %s45, %s46
    %p55 = scmp.eq.s32.totalorder %s14, 0
    %p56 = por %p54, %p55
    %p57 = scmp.ne.s32.totalorder %s45, %s46
    %p58 = scmp.eq.s32.totalorder %s15, 1
    %p59 = por %p57, %p58
    %p61 = scmp.ne.s32.totalorder %s46, %s60
    %p62 = scmp.eq.s32.totalorder %s15, 0
    %p63 = por %p61, %p62
    %s65 = sadd.s32 %s64, 1
    %p68 = scmp.eq.s32.totalorder %s9, 1
    %p69 = scmp.ne.s32.totalorder %s64, %s66
    %p70 = scmp.eq.s32.totalorder %s9, 0
    %p71 = por %p69, %p70
    %p72 = scmp.ne.s32.totalorder %s64, %s66
    %p73 = scmp.eq.s32.totalorder %s14, 1
    %p74 = por %p72, %p73
    %p75 = scmp.ne.s32.totalorder %s66, %s67
    %p76 = scmp.eq.s32.totalorder %s14, 0
    %p77 = por %p75, %p76
    %p78 = scmp.ne.s32.totalorder %s66, %s67
    %p79 = scmp.eq.s32.totalorder %s15, 1
    %p80 = por %p78, %p79
    %p82 = scmp.ne.s32.totalorder %s67, %s81
    %p83 = scmp.eq.s32.totalorder %s15, 0
    %p84 = por %p82, %p83
    %s85 = ssub.s32 %s9, %s16
    %p86 = scmp.eq.s32.totalorder %s85, 0
    %s88 = sadd.s32 %s87, 1
    %s89 = scalar_select %p86, %s87, %s88
    %p92 = pneg %p86
    %p93 = scmp.eq.s32.totalorder %s9, 1
    %p94 = por %p92, %p93
    %p95 = scmp.ne.s32.totalorder %s87, %s90
    %p96 = scmp.eq.s32.totalorder %s9, 0
    %p97 = por %p95, %p96
    %p98 = scmp.ne.s32.totalorder %s87, %s90
    %p99 = scmp.eq.s32.totalorder %s14, 1
    %p100 = por %p98, %p99
    %p101 = scmp.ne.s32.totalorder %s90, %s91
    %p102 = scmp.eq.s32.totalorder %s14, 0
    %p103 = por %p101, %p102
    %p104 = scmp.ne.s32.totalorder %s90, %s91
    %p105 = scmp.eq.s32.totalorder %s15, 1
    %p106 = por %p104, %p105
    %p108 = scmp.ne.s32.totalorder %s91, %s107
    %p109 = scmp.eq.s32.totalorder %s15, 0
    %p110 = por %p108, %p109
    %p111 = scmp.le.s32.totalorder 1, %s9
    %p112 = scmp.lt.s32.totalorder %s9, 3
    %p113 = pnand %p111, %p112
    %p114 = pneg %p113
    // Predicated region
    $region9: #{patch_discriminator_forward.6} parent=5 // pred_check
      _
    $region10: #{patch_discriminator_forward.6} parent=5 // pred_check_branch
      %116 = sbr.rel (%p113) target = $region12
    $region11: #{patch_discriminator_forward.6} parent=5 // pred_region
      %s117 = ssub.s32 %s9, 1
      // Predicated region
      $region13: #{patch_discriminator_forward.6} parent=11 // pred_check
        %p118 = pneg %p56
      $region14: #{patch_discriminator_forward.6} parent=11 // pred_check_branch
        %120 = sbr.rel (%p118) target = $region16
      $region15: #{patch_discriminator_forward.6} parent=11 // pred_region
        _
      $region16: #{patch_discriminator_forward.6} parent=11 // pred_fallthru
        _
      // Predicated region
      $region17: #{patch_discriminator_forward.6} parent=11 // pred_check
        %p121 = pneg %p77
      $region18: #{patch_discriminator_forward.6} parent=11 // pred_check_branch
        %123 = sbr.rel (%p121) target = $region20
      $region19: #{patch_discriminator_forward.6} parent=11 // pred_region
        _
      $region20: #{patch_discriminator_forward.6} parent=11 // pred_fallthru
        _
    $region12: #{patch_discriminator_forward.6} parent=5 // pred_fallthru
      _
    %p124 = scmp.lt.s32.totalorder %s9, 2
    // Predicated region
    $region21: #{patch_discriminator_forward.6} parent=5 // pred_check
      %p125 = pneg %p124
    $region22: #{patch_discriminator_forward.6} parent=5 // pred_check_branch
      %127 = sbr.rel (%p125) target = $region24
    $region23: #{patch_discriminator_forward.6} parent=5 // pred_region
      // Predicated region
      $region25: #{patch_discriminator_forward.6} parent=23 // pred_check
        %p128 = pneg %p29
      $region26: #{patch_discriminator_forward.6} parent=23 // pred_check_branch
        %130 = sbr.rel (%p128) target = $region28
      $region27: #{patch_discriminator_forward.6} parent=23 // pred_region
        %p131 = scmp.lt.s32.totalorder %s9, 1
        %s132 = scalar_select %p131, %s9, 1
        %s133 = smul.addr %s132, 8
        %s134 = smul.addr %s133, 4
        %s135 = scalar_lea.vmem %s0, %s134
      $region28: #{patch_discriminator_forward.6} parent=23 // pred_fallthru
        _
    $region24: #{patch_discriminator_forward.6} parent=5 // pred_fallthru
      _
    %p136 = scmp.le.s32.totalorder 1, %s9
    %p137 = scmp.lt.s32.totalorder %s9, 3
    %p138 = pnand %p136, %p137
    %p139 = pneg %p138
    // Predicated region
    $region29: #{patch_discriminator_forward.6} parent=5 // pred_check
      _
    $region30: #{patch_discriminator_forward.6} parent=5 // pred_check_branch
      %141 = sbr.rel (%p138) target = $region32
    $region31: #{patch_discriminator_forward.6} parent=5 // pred_region
      %s142 = ssub.s32 %s9, 1
      %p143 = scmp.lt.s32.totalorder %s14, 1
      %s144 = scalar_select %p143, %s14, 1
      %s145 = smul.addr %s144, 8
      %s146 = smul.addr %s145, 4
      %s147 = scalar_lea.vmem %s0, %s146
      %p148 = pneg %p35
      %p149 = pneg %p32
      %p150 = pneg %p56
      %p151 = pneg %p53
      %p152 = pneg %p77
      %p153 = pneg %p74
      %p154 = pneg %p103
      %p155 = pneg %p100
      %p156 = scmp.lt.s32.totalorder %s14, 1
      %s157 = scalar_select %p156, %s14, 1
      %s158 = smul.addr %s157, 8
      %s159 = smul.addr %s158, 4
      %s160 = scalar_lea.vmem %s3, %s159
      %p161 = scmp.lt.s32.totalorder %s14, 1
      %s162 = scalar_select %p161, %s14, 1
      %s163 = smul.addr %s162, 8
      %s164 = smul.addr %s163, 4
      %s165 = scalar_lea.vmem %s0, %s164
      %p166 = scmp.lt.s32.totalorder %s14, 1
      %s167 = scalar_select %p166, %s14, 1
      %s168 = smul.addr %s167, 8
      %s169 = smul.addr %s168, 4
      %s170 = scalar_lea.vmem %s3, %s169
      %v172 = vld [vmem:[%s165] sm:$0xf]
      %v173 = vld [vmem:[%s165 + $0x4] sm:$0xf]
      %v174 = vld [vmem:[%s165 + $0x8] sm:$0xf]
      %v175 = vld [vmem:[%s165 + $0xc] sm:$0xf]
      %v176 = vld [vmem:[%s165 + $0x10] sm:$0xf]
      %v177 = vld [vmem:[%s165 + $0x14] sm:$0xf]
      %v178 = vld [vmem:[%s165 + $0x18] sm:$0xf]
      %v179 = vld [vmem:[%s165 + $0x1c] sm:$0xf]
      %v180 = vld [vmem:[%s1] sm:$0xf]
      %v181 = vld [vmem:[%s1 + $0x4] sm:$0xf]
      %v182 = vld [vmem:[%s1 + $0x8] sm:$0xf]
      %v183 = vld [vmem:[%s1 + $0xc] sm:$0xf]
      %v184 = vld [vmem:[%s1 + $0x10] sm:$0xf]
      %v185 = vld [vmem:[%s1 + $0x14] sm:$0xf]
      %v186 = vld [vmem:[%s1 + $0x18] sm:$0xf]
      %v187 = vld [vmem:[%s1 + $0x1c] sm:$0xf]
      %v188 = vld [vmem:[%s1 + $0x20] sm:$0xf]
      %v189 = vld [vmem:[%s1 + $0x24] sm:$0xf]
      %v190 = vld [vmem:[%s1 + $0x28] sm:$0xf]
      %v191 = vld [vmem:[%s1 + $0x2c] sm:$0xf]
      %v192 = vld [vmem:[%s1 + $0x30] sm:$0xf]
      %v193 = vld [vmem:[%s1 + $0x34] sm:$0xf]
      %v194 = vld [vmem:[%s1 + $0x38] sm:$0xf]
      %v195 = vld [vmem:[%s1 + $0x3c] sm:$0xf]
      %v196 = vld [vmem:[%s2] sm:$0x1]
      %v198 = vlaneseq
      %v199 = vshrl.u32 %v198, 7
      %v200 = vsub.s32 0, %v199
      %v201 = vrot.slane %v196, %v200
      %v211 = vunpack.c.l.b16 %v172
      %v212 = vunpack.c.l.b16 %v173
      %v213 = vunpack.c.l.b16 %v174
      %v214 = vunpack.c.l.b16 %v175
      %v215 = vunpack.c.l.b16 %v176
      %v216 = vunpack.c.l.b16 %v177
      %v217 = vunpack.c.l.b16 %v178
      %v218 = vunpack.c.l.b16 %v179
      %v219 = vpack.c.b16 %v212, %v211
      %v220 = vpack.c.b16 %v214, %v213
      %v221 = vpack.c.b16 %v216, %v215
      %v222 = vpack.c.b16 %v218, %v217
      %v243 = vunpack.c.l.b16 %v180
      %v244 = vunpack.c.l.b16 %v181
      %v245 = vunpack.c.l.b16 %v182
      %v246 = vunpack.c.l.b16 %v183
      %v247 = vunpack.c.l.b16 %v184
      %v248 = vunpack.c.l.b16 %v185
      %v249 = vunpack.c.l.b16 %v186
      %v250 = vunpack.c.l.b16 %v187
      %v251 = vunpack.c.l.b16 %v188
      %v252 = vunpack.c.l.b16 %v189
      %v253 = vunpack.c.l.b16 %v190
      %v254 = vunpack.c.l.b16 %v191
      %v255 = vunpack.c.l.b16 %v192
      %v256 = vunpack.c.l.b16 %v193
      %v257 = vunpack.c.l.b16 %v194
      %v258 = vunpack.c.l.b16 %v195
      %v259 = vpack.c.b16 %v244, %v243
      %v260 = vpack.c.b16 %v246, %v245
      %v261 = vpack.c.b16 %v248, %v247
      %v262 = vpack.c.b16 %v250, %v249
      %v263 = vpack.c.b16 %v252, %v251
      %v264 = vpack.c.b16 %v254, %v253
      %v265 = vpack.c.b16 %v256, %v255
      %v266 = vpack.c.b16 %v258, %v257
      %275 = vmatprep.subr.bf16.mxu0 0
      %276 = vmatpush1.bf16.msra.mxu0 %v259
      %277 = vmatprep.subr.bf16.mxu0 0
      %278 = vmatpush1.bf16.msra.mxu0 %v260
      %279 = vmatprep.subr.bf16.mxu0 0
      %280 = vmatpush1.bf16.msra.mxu0 %v261
      %281 = vmatprep.subr.bf16.mxu0 0
      %282 = vmatpush1.bf16.msra.mxu0 %v262
      %283 = vmatprep.subr.bf16.mxu0 0
      %284 = vmatpush1.bf16.msra.mxu0 %v263
      %285 = vmatprep.subr.bf16.mxu0 0
      %286 = vmatpush1.bf16.msra.mxu0 %v264
      %287 = vmatprep.subr.bf16.mxu0 0
      %288 = vmatpush1.bf16.msra.mxu0 %v265
      %289 = vmatprep.subr.bf16.mxu0 0
      %290 = vmatpush1.bf16.msra.mxu0 %v266
      %291 = vmatprep.subr.bf16.mxu0 0
      %292 = vmatpush1.bf16.msra.mxu0 0
      %293 = vmatprep.subr.bf16.mxu0 0
      %294 = vmatpush1.bf16.msra.mxu0 0
      %295 = vmatprep.subr.bf16.mxu0 0
      %296 = vmatpush1.bf16.msra.mxu0 0
      %297 = vmatprep.subr.bf16.mxu0 0
      %298 = vmatpush1.bf16.msra.mxu0 0
      %299 = vmatprep.subr.bf16.mxu0 0
      %300 = vmatpush1.bf16.msra.mxu0 0
      %301 = vmatprep.subr.bf16.mxu0 0
      %302 = vmatpush1.bf16.msra.mxu0 0
      %303 = vmatprep.subr.bf16.mxu0 0
      %304 = vmatpush1.bf16.msra.mxu0 0
      %305 = vmatprep.subr.bf16.mxu0 0
      %306 = vmatpush1.bf16.msra.mxu0 0
      %307 = vmatprep.mubr.bf16.mxu0 0
      %308 = vmatmul.mubr.bf16.gmra.mrb[0].mxu0 %v219
      %v309 = vpop.f32.mrb[0].mxu0
      %v310 = vadd.f32 %v201, %v309
      %v311 = vpop.f32.mrb[0].mxu0
      %v312 = vpop.f32.mrb[0].mxu0
      %v313 = vadd.f32 %v201, %v312
      %v314 = vpop.f32.mrb[0].mxu0
      %315 = vmatprep.mubr.bf16.mxu0 0
      %316 = vmatmul.mubr.bf16.gmra.mrb[0].mxu0 %v220
      %v317 = vpop.f32.mrb[0].mxu0
      %v318 = vadd.f32 %v201, %v317
      %v319 = vpop.f32.mrb[0].mxu0
      %v320 = vpop.f32.mrb[0].mxu0
      %v321 = vadd.f32 %v201, %v320
      %v322 = vpop.f32.mrb[0].mxu0
      %323 = vmatprep.mubr.bf16.mxu0 0
      %324 = vmatmul.mubr.bf16.gmra.mrb[0].mxu0 %v221
      %v325 = vpop.f32.mrb[0].mxu0
      %v326 = vadd.f32 %v201, %v325
      %v327 = vpop.f32.mrb[0].mxu0
      %v328 = vpop.f32.mrb[0].mxu0
      %v329 = vadd.f32 %v201, %v328
      %v330 = vpop.f32.mrb[0].mxu0
      %331 = vmatprep.mubr.bf16.mxu0 0
      %332 = vmatmul.mubr.bf16.gmra.mrb[0].mxu0 %v222
      %v333 = vpop.f32.mrb[0].mxu0
      %v334 = vadd.f32 %v201, %v333
      %v335 = vpop.f32.mrb[0].mxu0
      %v336 = vpop.f32.mrb[0].mxu0
      %v337 = vadd.f32 %v201, %v336
      %v338 = vpop.f32.mrb[0].mxu0
      %339 = vdwg.mxu0
      %v340 = vadd.f32 %v310, %v313
      %v341 = vadd.f32 %v340, %v318
      %v342 = vadd.f32 %v341, %v321
      %v343 = vadd.f32 %v342, %v326
      %v344 = vadd.f32 %v343, %v329
      %v345 = vadd.f32 %v344, %v334
      %v346 = vadd.f32 %v345, %v337
      %v347 = vrot.slane %v346, 4
      %v348 = vadd.f32 %v346, %v347
      %v349 = vrot.slane %v348, 2
      %v350 = vadd.f32 %v348, %v349
      %v351 = vrot.slane %v350, 1
      %v352 = vadd.f32 %v350, %v351
      %v353 = vrcp.pop 64.0
      %v354 = vmul.f32 %v352, %v353
      %v355 = vsub.f32 %v310, %v354
      %v356 = vsub.f32 %v313, %v354
      %v357 = vsub.f32 %v318, %v354
      %v358 = vsub.f32 %v321, %v354
      %v359 = vsub.f32 %v326, %v354
      %v360 = vsub.f32 %v329, %v354
      %v361 = vsub.f32 %v334, %v354
      %v362 = vsub.f32 %v337, %v354
      %v363 = vmul.f32 %v355, %v355
      %v364 = vmul.f32 %v356, %v356
      %v365 = vmul.f32 %v357, %v357
      %v366 = vmul.f32 %v358, %v358
      %v367 = vmul.f32 %v359, %v359
      %v368 = vmul.f32 %v360, %v360
      %v369 = vmul.f32 %v361, %v361
      %v370 = vmul.f32 %v362, %v362
      %v371 = vadd.f32 %v363, %v364
      %v372 = vadd.f32 %v371, %v365
      %v373 = vadd.f32 %v372, %v366
      %v374 = vadd.f32 %v373, %v367
      %v375 = vadd.f32 %v374, %v368
      %v376 = vadd.f32 %v375, %v369
      %v377 = vadd.f32 %v376, %v370
      %v378 = vrot.slane %v377, 4
      %v379 = vadd.f32 %v377, %v378
      %v380 = vrot.slane %v379, 2
      %v381 = vadd.f32 %v379, %v380
      %v382 = vrot.slane %v381, 1
      %v383 = vadd.f32 %v381, %v382
      %v384 = vmul.f32 %v383, %v353
      %v385 = vadd.f32 %v384, 1e-05
      %v386 = vrsqrt.pop %v385
      %v387 = vmul.f32 %v355, %v386
      %v388 = vmul.f32 %v356, %v386
      %v389 = vmul.f32 %v357, %v386
      %v390 = vmul.f32 %v358, %v386
      %v391 = vmul.f32 %v359, %v386
      %v392 = vmul.f32 %v360, %v386
      %v393 = vmul.f32 %v361, %v386
      %v394 = vmul.f32 %v362, %v386
      %vm395 = vcmp.ge.f32.partialorder %v387, 0.0
      %vm396 = vcmp.ge.f32.partialorder %v388, 0.0
      %vm397 = vcmp.ge.f32.partialorder %v389, 0.0
      %vm398 = vcmp.ge.f32.partialorder %v390, 0.0
      %vm399 = vcmp.ge.f32.partialorder %v391, 0.0
      %vm400 = vcmp.ge.f32.partialorder %v392, 0.0
      %vm401 = vcmp.ge.f32.partialorder %v393, 0.0
      %vm402 = vcmp.ge.f32.partialorder %v394, 0.0
      %v403 = vmul.f32 %v387, 0.2
      %v404 = vmul.f32 %v388, 0.2
      %v405 = vmul.f32 %v389, 0.2
      %v406 = vmul.f32 %v390, 0.2
      %v407 = vmul.f32 %v391, 0.2
      %v408 = vmul.f32 %v392, 0.2
      %v409 = vmul.f32 %v393, 0.2
      %v410 = vmul.f32 %v394, 0.2
      %v411 = vsel %vm395, %v387, %v403
      %v412 = vsel %vm396, %v388, %v404
      %v413 = vsel %vm397, %v389, %v405
      %v414 = vsel %vm398, %v390, %v406
      %v415 = vsel %vm399, %v391, %v407
      %v416 = vsel %vm400, %v392, %v408
      %v417 = vsel %vm401, %v393, %v409
      %v418 = vsel %vm402, %v394, %v410
      %v419 = vpack.c.bf16 %v412, %v411
      %v420 = vpack.c.bf16 %v414, %v413
      %v421 = vpack.c.bf16 %v416, %v415
      %v422 = vpack.c.bf16 %v418, %v417
      %v427 = vunpack.c.l.b16 %v419
      %v428 = vunpack.c.h.b16 %v419
      %v429 = vunpack.c.l.b16 %v420
      %v430 = vunpack.c.h.b16 %v420
      %v431 = vunpack.c.l.b16 %v421
      %v432 = vunpack.c.h.b16 %v421
      %v433 = vunpack.c.l.b16 %v422
      %v434 = vunpack.c.h.b16 %v422
      %v435 = vpack.c.b16 %v427, %v427
      %v436 = vpack.c.b16 %v428, %v428
      %v437 = vpack.c.b16 %v429, %v429
      %v438 = vpack.c.b16 %v430, %v430
      %v439 = vpack.c.b16 %v431, %v431
      %v440 = vpack.c.b16 %v432, %v432
      %v441 = vpack.c.b16 %v433, %v433
      %v442 = vpack.c.b16 %v434, %v434
      %451 = vst [vmem:[%s170] sm:$0xf] %v435
      %452 = vst [vmem:[%s170 + $0x4] sm:$0xf] %v436
      %453 = vst [vmem:[%s170 + $0x8] sm:$0xf] %v437
      %454 = vst [vmem:[%s170 + $0xc] sm:$0xf] %v438
      %455 = vst [vmem:[%s170 + $0x10] sm:$0xf] %v439
      %456 = vst [vmem:[%s170 + $0x14] sm:$0xf] %v440
      %457 = vst [vmem:[%s170 + $0x18] sm:$0xf] %v441
      %458 = vst [vmem:[%s170 + $0x1c] sm:$0xf] %v442
      %p459 = scmp.lt.s32.totalorder %s14, 1
      %s460 = scalar_select %p459, %s14, 1
      %s461 = smul.addr %s460, 8
      %s462 = smul.addr %s461, 4
      %s463 = scalar_lea.vmem %s3, %s462
      // Predicated region
      $region33: #{patch_discriminator_forward.6} parent=31 // pred_check
        %p464 = pneg %p100
      $region34: #{patch_discriminator_forward.6} parent=31 // pred_check_branch
        %466 = sbr.rel (%p464) target = $region36
      $region35: #{patch_discriminator_forward.6} parent=31 // pred_region
        _
      $region36: #{patch_discriminator_forward.6} parent=31 // pred_fallthru
        _
    $region32: #{patch_discriminator_forward.6} parent=5 // pred_fallthru
      _
    %p467 = scmp.le.s32.totalorder 2, %s9
    // Predicated region
    $region37: #{patch_discriminator_forward.6} parent=5 // pred_check
      %p468 = pneg %p467
    $region38: #{patch_discriminator_forward.6} parent=5 // pred_check_branch
      %470 = sbr.rel (%p468) target = $region40
    $region39: #{patch_discriminator_forward.6} parent=5 // pred_region
      %s471 = ssub.s32 %s9, 2
      // Predicated region
      $region41: #{patch_discriminator_forward.6} parent=39 // pred_check
        %p472 = pneg %p106
      $region42: #{patch_discriminator_forward.6} parent=39 // pred_check_branch
        %474 = sbr.rel (%p472) target = $region44
      $region43: #{patch_discriminator_forward.6} parent=39 // pred_region
        %p475 = scmp.lt.s32.totalorder %s15, 1
        %s476 = scalar_select %p475, %s15, 1
        %s477 = smul.addr %s476, 8
        %s478 = smul.addr %s477, 4
        %s479 = scalar_lea.vmem %s3, %s478
      $region44: #{patch_discriminator_forward.6} parent=39 // pred_fallthru
        _
    $region40: #{patch_discriminator_forward.6} parent=5 // pred_fallthru
      _
  $region6: #{patch_discriminator_forward.6} parent=0 // loop_footer
    %s13 = sadd.s32 1, %s9
  $region7: #{patch_discriminator_forward.6} parent=0 // loop_footer_branch
    %8 = sbr.rel target = $region3
  $region8: #{patch_discriminator_forward.6} parent=0 // loop_exit
    _

// kernel: patch_discriminator_forward.7
$region0: #{patch_discriminator_forward.7}
  #allocation0 [shape = 'u32[]', space=smem, size = 0x4, offset = 0x4, fixed_abs, tag = 'smem constant byte address 0x4 - core index']
  #allocation1 [shape = 'u32[144,128]{1,0:T(1,128)}', space=vmem, size = 0x12000, scoped, tag = 'internal scratch']
  %s0 = inlined_call_operand.vmem [shape: bf16[2,16,256], index: 0, kind: input, shape index: {}]
  %s1 = inlined_call_operand.vmem [shape: bf16[256,128], index: 1, kind: input, shape index: {}]
  %s2 = inlined_call_operand.vmem [shape: f32[1,128], index: 2, kind: input, shape index: {}]
  %s3 = inlined_call_operand.vmem [shape: bf16[2,16,128], index: 3, kind: output, shape index: {}]
  %s4 = sld [smem:[#allocation0]]
  $region45: #{patch_discriminator_forward.7} parent=0
    _
  %s6 = ssub.s32 1, %s4
  %s7 = scalar_select 0, %s6, %s4
  loop: start=0, step=1, limit=4
  $region2: #{patch_discriminator_forward.7} parent=0 // loop_pre_header
    _
  $region3: #{patch_discriminator_forward.7} parent=0 // loop_header
    %s9 = sphi 0, %s13
    %p10 = scmp.ge.s32.totalorder %s9, 4
    %s19 = sphi 0, %s21
    %s22 = sphi 0, %s19
    %s23 = sphi 0, %s22
    %s39 = sphi 0, %s23
    %s43 = sphi 0, %s43
    %s45 = sphi 0, %s43
    %s46 = sphi 0, %s45
    %s60 = sphi 0, %s46
    %s64 = sphi 0, %s64
    %s66 = sphi 0, %s64
    %s67 = sphi 0, %s66
    %s81 = sphi 0, %s67
    %s87 = sphi 0, %s89
    %s90 = sphi 0, %s87
    %s91 = sphi 0, %s90
    %s107 = sphi 0, %s91
  $region4: #{patch_discriminator_forward.7} parent=0 // loop_header_branch
    %12 = sbr.rel (%p10) target = $region8
  $region5: #{patch_discriminator_forward.7} parent=0 // loop_body
    %s14 = ssub.s32 %s9, 1
    %s15 = ssub.s32 %s9, 2
    %s16 = sadd.s32 %s9, 1
    %s17 = ssub.s32 %s9, %s16
    %p18 = scmp.eq.s32.totalorder %s17, 0
    %s20 = sadd.s32 %s19, 1
    %s21 = scalar_select %p18, %s19, %s20
    %p24 = pneg %p18
    %p25 = scmp.eq.s32.totalorder %s9, 1
    %p26 = por %p24, %p25
    %p27 = scmp.ne.s32.totalorder %s19, %s22
    %p28 = scmp.eq.s32.totalorder %s9, 0
    %p29 = por %p27, %p28
    %p30 = scmp.ne.s32.totalorder %s19, %s22
    %p31 = scmp.eq.s32.totalorder %s14, 1
    %p32 = por %p30, %p31
    %p33 = scmp.ne.s32.totalorder %s22, %s23
    %p34 = scmp.eq.s32.totalorder %s14, 0
    %p35 = por %p33, %p34
    %p36 = scmp.ne.s32.totalorder %s22, %s23
    %p37 = scmp.eq.s32.totalorder %s15, 1
    %p38 = por %p36, %p37
    %p40 = scmp.ne.s32.totalorder %s23, %s39
    %p41 = scmp.eq.s32.totalorder %s15, 0
    %p42 = por %p40, %p41
    %s44 = sadd.s32 %s43, 1
    %p47 = scmp.eq.s32.totalorder %s9, 1
    %p48 = scmp.ne.s32.totalorder %s43, %s45
    %p49 = scmp.eq.s32.totalorder %s9, 0
    %p50 = por %p48, %p49
    %p51 = scmp.ne.s32.totalorder %s43, %s45
    %p52 = scmp.eq.s32.totalorder %s14, 1
    %p53 = por %p51, %p52
    %p54 = scmp.ne.s32.totalorder %s45, %s46
    %p55 = scmp.eq.s32.totalorder %s14, 0
    %p56 = por %p54, %p55
    %p57 = scmp.ne.s32.totalorder %s45, %s46
    %p58 = scmp.eq.s32.totalorder %s15, 1
    %p59 = por %p57, %p58
    %p61 = scmp.ne.s32.totalorder %s46, %s60
    %p62 = scmp.eq.s32.totalorder %s15, 0
    %p63 = por %p61, %p62
    %s65 = sadd.s32 %s64, 1
    %p68 = scmp.eq.s32.totalorder %s9, 1
    %p69 = scmp.ne.s32.totalorder %s64, %s66
    %p70 = scmp.eq.s32.totalorder %s9, 0
    %p71 = por %p69, %p70
    %p72 = scmp.ne.s32.totalorder %s64, %s66
    %p73 = scmp.eq.s32.totalorder %s14, 1
    %p74 = por %p72, %p73
    %p75 = scmp.ne.s32.totalorder %s66, %s67
    %p76 = scmp.eq.s32.totalorder %s14, 0
    %p77 = por %p75, %p76
    %p78 = scmp.ne.s32.totalorder %s66, %s67
    %p79 = scmp.eq.s32.totalorder %s15, 1
    %p80 = por %p78, %p79
    %p82 = scmp.ne.s32.totalorder %s67, %s81
    %p83 = scmp.eq.s32.totalorder %s15, 0
    %p84 = por %p82, %p83
    %s85 = ssub.s32 %s9, %s16
    %p86 = scmp.eq.s32.totalorder %s85, 0
    %s88 = sadd.s32 %s87, 1
    %s89 = scalar_select %p86, %s87, %s88
    %p92 = pneg %p86
    %p93 = scmp.eq.s32.totalorder %s9, 1
    %p94 = por %p92, %p93
    %p95 = scmp.ne.s32.totalorder %s87, %s90
    %p96 = scmp.eq.s32.totalorder %s9, 0
    %p97 = por %p95, %p96
    %p98 = scmp.ne.s32.totalorder %s87, %s90
    %p99 = scmp.eq.s32.totalorder %s14, 1
    %p100 = por %p98, %p99
    %p101 = scmp.ne.s32.totalorder %s90, %s91
    %p102 = scmp.eq.s32.totalorder %s14, 0
    %p103 = por %p101, %p102
    %p104 = scmp.ne.s32.totalorder %s90, %s91
    %p105 = scmp.eq.s32.totalorder %s15, 1
    %p106 = por %p104, %p105
    %p108 = scmp.ne.s32.totalorder %s91, %s107
    %p109 = scmp.eq.s32.totalorder %s15, 0
    %p110 = por %p108, %p109
    %p111 = scmp.le.s32.totalorder 1, %s9
    %p112 = scmp.lt.s32.totalorder %s9, 3
    %p113 = pnand %p111, %p112
    %p114 = pneg %p113
    // Predicated region
    $region9: #{patch_discriminator_forward.7} parent=5 // pred_check
      _
    $region10: #{patch_discriminator_forward.7} parent=5 // pred_check_branch
      %116 = sbr.rel (%p113) target = $region12
    $region11: #{patch_discriminator_forward.7} parent=5 // pred_region
      %s117 = ssub.s32 %s9, 1
      // Predicated region
      $region13: #{patch_discriminator_forward.7} parent=11 // pred_check
        %p118 = pneg %p56
      $region14: #{patch_discriminator_forward.7} parent=11 // pred_check_branch
        %120 = sbr.rel (%p118) target = $region16
      $region15: #{patch_discriminator_forward.7} parent=11 // pred_region
        _
      $region16: #{patch_discriminator_forward.7} parent=11 // pred_fallthru
        _
      // Predicated region
      $region17: #{patch_discriminator_forward.7} parent=11 // pred_check
        %p121 = pneg %p77
      $region18: #{patch_discriminator_forward.7} parent=11 // pred_check_branch
        %123 = sbr.rel (%p121) target = $region20
      $region19: #{patch_discriminator_forward.7} parent=11 // pred_region
        _
      $region20: #{patch_discriminator_forward.7} parent=11 // pred_fallthru
        _
    $region12: #{patch_discriminator_forward.7} parent=5 // pred_fallthru
      _
    %p124 = scmp.lt.s32.totalorder %s9, 2
    // Predicated region
    $region21: #{patch_discriminator_forward.7} parent=5 // pred_check
      %p125 = pneg %p124
    $region22: #{patch_discriminator_forward.7} parent=5 // pred_check_branch
      %127 = sbr.rel (%p125) target = $region24
    $region23: #{patch_discriminator_forward.7} parent=5 // pred_region
      // Predicated region
      $region25: #{patch_discriminator_forward.7} parent=23 // pred_check
        %p128 = pneg %p29
      $region26: #{patch_discriminator_forward.7} parent=23 // pred_check_branch
        %130 = sbr.rel (%p128) target = $region28
      $region27: #{patch_discriminator_forward.7} parent=23 // pred_region
        %p131 = scmp.lt.s32.totalorder %s9, 1
        %s132 = scalar_select %p131, %s9, 1
        %s133 = smul.addr %s132, 4
        %s134 = smul.addr %s133, 4
        %s135 = scalar_lea.vmem %s0, %s134
      $region28: #{patch_discriminator_forward.7} parent=23 // pred_fallthru
        _
    $region24: #{patch_discriminator_forward.7} parent=5 // pred_fallthru
      _
    %p136 = scmp.le.s32.totalorder 1, %s9
    %p137 = scmp.lt.s32.totalorder %s9, 3
    %p138 = pnand %p136, %p137
    %p139 = pneg %p138
    // Predicated region
    $region29: #{patch_discriminator_forward.7} parent=5 // pred_check
      _
    $region30: #{patch_discriminator_forward.7} parent=5 // pred_check_branch
      %141 = sbr.rel (%p138) target = $region32
    $region31: #{patch_discriminator_forward.7} parent=5 // pred_region
      %s142 = ssub.s32 %s9, 1
      %p143 = scmp.lt.s32.totalorder %s14, 1
      %s144 = scalar_select %p143, %s14, 1
      %s145 = smul.addr %s144, 4
      %s146 = smul.addr %s145, 4
      %s147 = scalar_lea.vmem %s0, %s146
      %p148 = pneg %p35
      %p149 = pneg %p32
      %p150 = pneg %p56
      %p151 = pneg %p53
      %p152 = pneg %p77
      %p153 = pneg %p74
      %p154 = pneg %p103
      %p155 = pneg %p100
      %p156 = scmp.lt.s32.totalorder %s14, 1
      %s157 = scalar_select %p156, %s14, 1
      %s158 = smul.addr %s157, 2
      %s159 = smul.addr %s158, 4
      %s160 = scalar_lea.vmem %s3, %s159
      %p161 = scmp.lt.s32.totalorder %s14, 1
      %s162 = scalar_select %p161, %s14, 1
      %s163 = smul.addr %s162, 4
      %s164 = smul.addr %s163, 4
      %s165 = scalar_lea.vmem %s0, %s164
      %p166 = scmp.lt.s32.totalorder %s14, 1
      %s167 = scalar_select %p166, %s14, 1
      %s168 = smul.addr %s167, 2
      %s169 = smul.addr %s168, 4
      %s170 = scalar_lea.vmem %s3, %s169
      %v172 = vld [vmem:[%s165] sm:$0xff]
      %v173 = vld [vmem:[%s165 + $0x8] sm:$0xff]
      %v174 = vld [vmem:[%s1] sm:$0xf]
      %v175 = vld [vmem:[%s1 + $0x4] sm:$0xf]
      %v176 = vld [vmem:[%s1 + $0x8] sm:$0xf]
      %v177 = vld [vmem:[%s1 + $0xc] sm:$0xf]
      %v178 = vld [vmem:[%s1 + $0x10] sm:$0xf]
      %v179 = vld [vmem:[%s1 + $0x14] sm:$0xf]
      %v180 = vld [vmem:[%s1 + $0x18] sm:$0xf]
      %v181 = vld [vmem:[%s1 + $0x1c] sm:$0xf]
      %v182 = vld [vmem:[%s1 + $0x20] sm:$0xf]
      %v183 = vld [vmem:[%s1 + $0x24] sm:$0xf]
      %v184 = vld [vmem:[%s1 + $0x28] sm:$0xf]
      %v185 = vld [vmem:[%s1 + $0x2c] sm:$0xf]
      %v186 = vld [vmem:[%s1 + $0x30] sm:$0xf]
      %v187 = vld [vmem:[%s1 + $0x34] sm:$0xf]
      %v188 = vld [vmem:[%s1 + $0x38] sm:$0xf]
      %v189 = vld [vmem:[%s1 + $0x3c] sm:$0xf]
      %v190 = vld [vmem:[%s1 + $0x40] sm:$0xf]
      %v191 = vld [vmem:[%s1 + $0x44] sm:$0xf]
      %v192 = vld [vmem:[%s1 + $0x48] sm:$0xf]
      %v193 = vld [vmem:[%s1 + $0x4c] sm:$0xf]
      %v194 = vld [vmem:[%s1 + $0x50] sm:$0xf]
      %v195 = vld [vmem:[%s1 + $0x54] sm:$0xf]
      %v196 = vld [vmem:[%s1 + $0x58] sm:$0xf]
      %v197 = vld [vmem:[%s1 + $0x5c] sm:$0xf]
      %v198 = vld [vmem:[%s1 + $0x60] sm:$0xf]
      %v199 = vld [vmem:[%s1 + $0x64] sm:$0xf]
      %v200 = vld [vmem:[%s1 + $0x68] sm:$0xf]
      %v201 = vld [vmem:[%s1 + $0x6c] sm:$0xf]
      %v202 = vld [vmem:[%s1 + $0x70] sm:$0xf]
      %v203 = vld [vmem:[%s1 + $0x74] sm:$0xf]
      %v204 = vld [vmem:[%s1 + $0x78] sm:$0xf]
      %v205 = vld [vmem:[%s1 + $0x7c] sm:$0xf]
      %v206 = vld [vmem:[%s2] sm:$0x1]
      %v208 = vlaneseq
      %v209 = vshrl.u32 %v208, 7
      %v210 = vsub.s32 0, %v209
      %v211 = vrot.slane %v206, %v210
      %v215 = vunpack.c.l.b16 %v172
      %v216 = vunpack.c.h.b16 %v172
      %v217 = vunpack.c.l.b16 %v173
      %v218 = vunpack.c.h.b16 %v173
      %v219 = vpack.c.b16 %v217, %v215
      %v220 = vpack.c.b16 %v218, %v216
      %v255 = vunpack.c.l.b16 %v174
      %v256 = vunpack.c.l.b16 %v175
      %v257 = vunpack.c.l.b16 %v176
      %v258 = vunpack.c.l.b16 %v177
      %v259 = vunpack.c.l.b16 %v178
      %v260 = vunpack.c.l.b16 %v179
      %v261 = vunpack.c.l.b16 %v180
      %v262 = vunpack.c.l.b16 %v181
      %v263 = vunpack.c.l.b16 %v182
      %v264 = vunpack.c.l.b16 %v183
      %v265 = vunpack.c.l.b16 %v184
      %v266 = vunpack.c.l.b16 %v185
      %v267 = vunpack.c.l.b16 %v186
      %v268 = vunpack.c.l.b16 %v187
      %v269 = vunpack.c.l.b16 %v188
      %v270 = vunpack.c.l.b16 %v189
      %v271 = vunpack.c.l.b16 %v190
      %v272 = vunpack.c.l.b16 %v191
      %v273 = vunpack.c.l.b16 %v192
      %v274 = vunpack.c.l.b16 %v193
      %v275 = vunpack.c.l.b16 %v194
      %v276 = vunpack.c.l.b16 %v195
      %v277 = vunpack.c.l.b16 %v196
      %v278 = vunpack.c.l.b16 %v197
      %v279 = vunpack.c.l.b16 %v198
      %v280 = vunpack.c.l.b16 %v199
      %v281 = vunpack.c.l.b16 %v200
      %v282 = vunpack.c.l.b16 %v201
      %v283 = vunpack.c.l.b16 %v202
      %v284 = vunpack.c.l.b16 %v203
      %v285 = vunpack.c.l.b16 %v204
      %v286 = vunpack.c.l.b16 %v205
      %v287 = vpack.c.b16 %v256, %v255
      %v288 = vpack.c.b16 %v258, %v257
      %v289 = vpack.c.b16 %v260, %v259
      %v290 = vpack.c.b16 %v262, %v261
      %v291 = vpack.c.b16 %v264, %v263
      %v292 = vpack.c.b16 %v266, %v265
      %v293 = vpack.c.b16 %v268, %v267
      %v294 = vpack.c.b16 %v270, %v269
      %v295 = vpack.c.b16 %v272, %v271
      %v296 = vpack.c.b16 %v274, %v273
      %v297 = vpack.c.b16 %v276, %v275
      %v298 = vpack.c.b16 %v278, %v277
      %v299 = vpack.c.b16 %v280, %v279
      %v300 = vpack.c.b16 %v282, %v281
      %v301 = vpack.c.b16 %v284, %v283
      %v302 = vpack.c.b16 %v286, %v285
      %319 = vmatprep.subr.bf16.mxu0 0
      %320 = vmatpush1.bf16.msra.mxu0 %v287
      %321 = vmatprep.subr.bf16.mxu0 0
      %322 = vmatpush1.bf16.msra.mxu0 %v288
      %323 = vmatprep.subr.bf16.mxu0 0
      %324 = vmatpush1.bf16.msra.mxu0 %v289
      %325 = vmatprep.subr.bf16.mxu0 0
      %326 = vmatpush1.bf16.msra.mxu0 %v290
      %327 = vmatprep.subr.bf16.mxu0 0
      %328 = vmatpush1.bf16.msra.mxu0 %v291
      %329 = vmatprep.subr.bf16.mxu0 0
      %330 = vmatpush1.bf16.msra.mxu0 %v292
      %331 = vmatprep.subr.bf16.mxu0 0
      %332 = vmatpush1.bf16.msra.mxu0 %v293
      %333 = vmatprep.subr.bf16.mxu0 0
      %334 = vmatpush1.bf16.msra.mxu0 %v294
      %335 = vmatprep.subr.bf16.mxu0 0
      %336 = vmatpush1.bf16.msra.mxu0 %v295
      %337 = vmatprep.subr.bf16.mxu0 0
      %338 = vmatpush1.bf16.msra.mxu0 %v296
      %339 = vmatprep.subr.bf16.mxu0 0
      %340 = vmatpush1.bf16.msra.mxu0 %v297
      %341 = vmatprep.subr.bf16.mxu0 0
      %342 = vmatpush1.bf16.msra.mxu0 %v298
      %343 = vmatprep.subr.bf16.mxu0 0
      %344 = vmatpush1.bf16.msra.mxu0 %v299
      %345 = vmatprep.subr.bf16.mxu0 0
      %346 = vmatpush1.bf16.msra.mxu0 %v300
      %347 = vmatprep.subr.bf16.mxu0 0
      %348 = vmatpush1.bf16.msra.mxu0 %v301
      %349 = vmatprep.subr.bf16.mxu0 0
      %350 = vmatpush1.bf16.msra.mxu0 %v302
      %351 = vmatprep.mubr.bf16.mxu0 %v220
      %352 = vmatmul.mubr.bf16.gmra.mrb[0].mxu0 %v219
      %v353 = vpop.f32.mrb[0].mxu0
      %v354 = vadd.f32 %v211, %v353
      %v355 = vpop.f32.mrb[0].mxu0
      %v356 = vpop.f32.mrb[0].mxu0
      %v357 = vadd.f32 %v211, %v356
      %v358 = vpop.f32.mrb[0].mxu0
      %359 = vdwg.mxu0
      %v360 = vadd.f32 %v354, %v357
      %v361 = vrot.slane %v360, 4
      %v362 = vadd.f32 %v360, %v361
      %v363 = vrot.slane %v362, 2
      %v364 = vadd.f32 %v362, %v363
      %v365 = vrot.slane %v364, 1
      %v366 = vadd.f32 %v364, %v365
      %v367 = vrcp.pop 16.0
      %v368 = vmul.f32 %v366, %v367
      %v369 = vsub.f32 %v354, %v368
      %v370 = vsub.f32 %v357, %v368
      %v371 = vmul.f32 %v369, %v369
      %v372 = vmul.f32 %v370, %v370
      %v373 = vadd.f32 %v371, %v372
      %v374 = vrot.slane %v373, 4
      %v375 = vadd.f32 %v373, %v374
      %v376 = vrot.slane %v375, 2
      %v377 = vadd.f32 %v375, %v376
      %v378 = vrot.slane %v377, 1
      %v379 = vadd.f32 %v377, %v378
      %v380 = vmul.f32 %v379, %v367
      %v381 = vadd.f32 %v380, 1e-05
      %v382 = vrsqrt.pop %v381
      %v383 = vmul.f32 %v369, %v382
      %v384 = vmul.f32 %v370, %v382
      %vm385 = vcmp.ge.f32.partialorder %v383, 0.0
      %vm386 = vcmp.ge.f32.partialorder %v384, 0.0
      %v387 = vmul.f32 %v383, 0.2
      %v388 = vmul.f32 %v384, 0.2
      %v389 = vsel %vm385, %v383, %v387
      %v390 = vsel %vm386, %v384, %v388
      %v391 = vpack.c.bf16 %v390, %v389
      %v393 = vunpack.c.l.b16 %v391
      %v394 = vunpack.c.h.b16 %v391
      %v395 = vpack.c.b16 %v393, %v393
      %v396 = vpack.c.b16 %v394, %v394
      %399 = vst [vmem:[%s170] sm:$0xf] %v395
      %400 = vst [vmem:[%s170 + $0x4] sm:$0xf] %v396
      %p401 = scmp.lt.s32.totalorder %s14, 1
      %s402 = scalar_select %p401, %s14, 1
      %s403 = smul.addr %s402, 2
      %s404 = smul.addr %s403, 4
      %s405 = scalar_lea.vmem %s3, %s404
      // Predicated region
      $region33: #{patch_discriminator_forward.7} parent=31 // pred_check
        %p406 = pneg %p100
      $region34: #{patch_discriminator_forward.7} parent=31 // pred_check_branch
        %408 = sbr.rel (%p406) target = $region36
      $region35: #{patch_discriminator_forward.7} parent=31 // pred_region
        _
      $region36: #{patch_discriminator_forward.7} parent=31 // pred_fallthru
        _
    $region32: #{patch_discriminator_forward.7} parent=5 // pred_fallthru
      _
    %p409 = scmp.le.s32.totalorder 2, %s9
    // Predicated region
    $region37: #{patch_discriminator_forward.7} parent=5 // pred_check
      %p410 = pneg %p409
    $region38: #{patch_discriminator_forward.7} parent=5 // pred_check_branch
      %412 = sbr.rel (%p410) target = $region40
    $region39: #{patch_discriminator_forward.7} parent=5 // pred_region
      %s413 = ssub.s32 %s9, 2
      // Predicated region
      $region41: #{patch_discriminator_forward.7} parent=39 // pred_check
        %p414 = pneg %p106
      $region42: #{patch_discriminator_forward.7} parent=39 // pred_check_branch
        %416 = sbr.rel (%p414) target = $region44
      $region43: #{patch_discriminator_forward.7} parent=39 // pred_region
        %p417 = scmp.lt.s32.totalorder %s15, 1
        %s418 = scalar_select %p417, %s15, 1
        %s419 = smul.addr %s418, 2
        %s420 = smul.addr %s419, 4
        %s421 = scalar_lea.vmem %s3, %s420
      $region44: #{patch_discriminator_forward.7} parent=39 // pred_fallthru
        _
    $region40: #{patch_discriminator_forward.7} parent=5 // pred_fallthru
      _
  $region6: #{patch_discriminator_forward.7} parent=0 // loop_footer
    %s13 = sadd.s32 1, %s9
  $region7: #{patch_discriminator_forward.7} parent=0 // loop_footer_branch
    %8 = sbr.rel target = $region3
  $region8: #{patch_discriminator_forward.7} parent=0 // loop_exit
    _

// kernel: patch_discriminator_forward.8
$region0: #{patch_discriminator_forward.8}
  #allocation0 [shape = 'u32[]', space=smem, size = 0x4, offset = 0x4, fixed_abs, tag = 'smem constant byte address 0x4 - core index']
  #allocation1 [shape = 'u32[144,128]{1,0:T(1,128)}', space=vmem, size = 0x12000, scoped, tag = 'internal scratch']
  %s0 = inlined_call_operand.vmem [shape: bf16[2,4,512], index: 0, kind: input, shape index: {}]
  %s1 = inlined_call_operand.vmem [shape: bf16[512,128], index: 1, kind: input, shape index: {}]
  %s2 = inlined_call_operand.vmem [shape: f32[1,128], index: 2, kind: input, shape index: {}]
  %s3 = inlined_call_operand.vmem [shape: bf16[2,4,128], index: 3, kind: output, shape index: {}]
  %s4 = sld [smem:[#allocation0]]
  $region45: #{patch_discriminator_forward.8} parent=0
    _
  %s6 = ssub.s32 1, %s4
  %s7 = scalar_select 0, %s6, %s4
  loop: start=0, step=1, limit=4
  $region2: #{patch_discriminator_forward.8} parent=0 // loop_pre_header
    _
  $region3: #{patch_discriminator_forward.8} parent=0 // loop_header
    %s9 = sphi 0, %s13
    %p10 = scmp.ge.s32.totalorder %s9, 4
    %s19 = sphi 0, %s21
    %s22 = sphi 0, %s19
    %s23 = sphi 0, %s22
    %s39 = sphi 0, %s23
    %s43 = sphi 0, %s43
    %s45 = sphi 0, %s43
    %s46 = sphi 0, %s45
    %s60 = sphi 0, %s46
    %s64 = sphi 0, %s64
    %s66 = sphi 0, %s64
    %s67 = sphi 0, %s66
    %s81 = sphi 0, %s67
    %s87 = sphi 0, %s89
    %s90 = sphi 0, %s87
    %s91 = sphi 0, %s90
    %s107 = sphi 0, %s91
  $region4: #{patch_discriminator_forward.8} parent=0 // loop_header_branch
    %12 = sbr.rel (%p10) target = $region8
  $region5: #{patch_discriminator_forward.8} parent=0 // loop_body
    %s14 = ssub.s32 %s9, 1
    %s15 = ssub.s32 %s9, 2
    %s16 = sadd.s32 %s9, 1
    %s17 = ssub.s32 %s9, %s16
    %p18 = scmp.eq.s32.totalorder %s17, 0
    %s20 = sadd.s32 %s19, 1
    %s21 = scalar_select %p18, %s19, %s20
    %p24 = pneg %p18
    %p25 = scmp.eq.s32.totalorder %s9, 1
    %p26 = por %p24, %p25
    %p27 = scmp.ne.s32.totalorder %s19, %s22
    %p28 = scmp.eq.s32.totalorder %s9, 0
    %p29 = por %p27, %p28
    %p30 = scmp.ne.s32.totalorder %s19, %s22
    %p31 = scmp.eq.s32.totalorder %s14, 1
    %p32 = por %p30, %p31
    %p33 = scmp.ne.s32.totalorder %s22, %s23
    %p34 = scmp.eq.s32.totalorder %s14, 0
    %p35 = por %p33, %p34
    %p36 = scmp.ne.s32.totalorder %s22, %s23
    %p37 = scmp.eq.s32.totalorder %s15, 1
    %p38 = por %p36, %p37
    %p40 = scmp.ne.s32.totalorder %s23, %s39
    %p41 = scmp.eq.s32.totalorder %s15, 0
    %p42 = por %p40, %p41
    %s44 = sadd.s32 %s43, 1
    %p47 = scmp.eq.s32.totalorder %s9, 1
    %p48 = scmp.ne.s32.totalorder %s43, %s45
    %p49 = scmp.eq.s32.totalorder %s9, 0
    %p50 = por %p48, %p49
    %p51 = scmp.ne.s32.totalorder %s43, %s45
    %p52 = scmp.eq.s32.totalorder %s14, 1
    %p53 = por %p51, %p52
    %p54 = scmp.ne.s32.totalorder %s45, %s46
    %p55 = scmp.eq.s32.totalorder %s14, 0
    %p56 = por %p54, %p55
    %p57 = scmp.ne.s32.totalorder %s45, %s46
    %p58 = scmp.eq.s32.totalorder %s15, 1
    %p59 = por %p57, %p58
    %p61 = scmp.ne.s32.totalorder %s46, %s60
    %p62 = scmp.eq.s32.totalorder %s15, 0
    %p63 = por %p61, %p62
    %s65 = sadd.s32 %s64, 1
    %p68 = scmp.eq.s32.totalorder %s9, 1
    %p69 = scmp.ne.s32.totalorder %s64, %s66
    %p70 = scmp.eq.s32.totalorder %s9, 0
    %p71 = por %p69, %p70
    %p72 = scmp.ne.s32.totalorder %s64, %s66
    %p73 = scmp.eq.s32.totalorder %s14, 1
    %p74 = por %p72, %p73
    %p75 = scmp.ne.s32.totalorder %s66, %s67
    %p76 = scmp.eq.s32.totalorder %s14, 0
    %p77 = por %p75, %p76
    %p78 = scmp.ne.s32.totalorder %s66, %s67
    %p79 = scmp.eq.s32.totalorder %s15, 1
    %p80 = por %p78, %p79
    %p82 = scmp.ne.s32.totalorder %s67, %s81
    %p83 = scmp.eq.s32.totalorder %s15, 0
    %p84 = por %p82, %p83
    %s85 = ssub.s32 %s9, %s16
    %p86 = scmp.eq.s32.totalorder %s85, 0
    %s88 = sadd.s32 %s87, 1
    %s89 = scalar_select %p86, %s87, %s88
    %p92 = pneg %p86
    %p93 = scmp.eq.s32.totalorder %s9, 1
    %p94 = por %p92, %p93
    %p95 = scmp.ne.s32.totalorder %s87, %s90
    %p96 = scmp.eq.s32.totalorder %s9, 0
    %p97 = por %p95, %p96
    %p98 = scmp.ne.s32.totalorder %s87, %s90
    %p99 = scmp.eq.s32.totalorder %s14, 1
    %p100 = por %p98, %p99
    %p101 = scmp.ne.s32.totalorder %s90, %s91
    %p102 = scmp.eq.s32.totalorder %s14, 0
    %p103 = por %p101, %p102
    %p104 = scmp.ne.s32.totalorder %s90, %s91
    %p105 = scmp.eq.s32.totalorder %s15, 1
    %p106 = por %p104, %p105
    %p108 = scmp.ne.s32.totalorder %s91, %s107
    %p109 = scmp.eq.s32.totalorder %s15, 0
    %p110 = por %p108, %p109
    %p111 = scmp.le.s32.totalorder 1, %s9
    %p112 = scmp.lt.s32.totalorder %s9, 3
    %p113 = pnand %p111, %p112
    %p114 = pneg %p113
    // Predicated region
    $region9: #{patch_discriminator_forward.8} parent=5 // pred_check
      _
    $region10: #{patch_discriminator_forward.8} parent=5 // pred_check_branch
      %116 = sbr.rel (%p113) target = $region12
    $region11: #{patch_discriminator_forward.8} parent=5 // pred_region
      %s117 = ssub.s32 %s9, 1
      // Predicated region
      $region13: #{patch_discriminator_forward.8} parent=11 // pred_check
        %p118 = pneg %p56
      $region14: #{patch_discriminator_forward.8} parent=11 // pred_check_branch
        %120 = sbr.rel (%p118) target = $region16
      $region15: #{patch_discriminator_forward.8} parent=11 // pred_region
        _
      $region16: #{patch_discriminator_forward.8} parent=11 // pred_fallthru
        _
      // Predicated region
      $region17: #{patch_discriminator_forward.8} parent=11 // pred_check
        %p121 = pneg %p77
      $region18: #{patch_discriminator_forward.8} parent=11 // pred_check_branch
        %123 = sbr.rel (%p121) target = $region20
      $region19: #{patch_discriminator_forward.8} parent=11 // pred_region
        _
      $region20: #{patch_discriminator_forward.8} parent=11 // pred_fallthru
        _
    $region12: #{patch_discriminator_forward.8} parent=5 // pred_fallthru
      _
    %p124 = scmp.lt.s32.totalorder %s9, 2
    // Predicated region
    $region21: #{patch_discriminator_forward.8} parent=5 // pred_check
      %p125 = pneg %p124
    $region22: #{patch_discriminator_forward.8} parent=5 // pred_check_branch
      %127 = sbr.rel (%p125) target = $region24
    $region23: #{patch_discriminator_forward.8} parent=5 // pred_region
      // Predicated region
      $region25: #{patch_discriminator_forward.8} parent=23 // pred_check
        %p128 = pneg %p29
      $region26: #{patch_discriminator_forward.8} parent=23 // pred_check_branch
        %130 = sbr.rel (%p128) target = $region28
      $region27: #{patch_discriminator_forward.8} parent=23 // pred_region
        %p131 = scmp.lt.s32.totalorder %s9, 1
        %s132 = scalar_select %p131, %s9, 1
        %s133 = smul.addr %s132, 4
        %s134 = smul.addr %s133, 2
        %s135 = scalar_lea.vmem %s0, %s134
      $region28: #{patch_discriminator_forward.8} parent=23 // pred_fallthru
        _
    $region24: #{patch_discriminator_forward.8} parent=5 // pred_fallthru
      _
    %p136 = scmp.le.s32.totalorder 1, %s9
    %p137 = scmp.lt.s32.totalorder %s9, 3
    %p138 = pnand %p136, %p137
    %p139 = pneg %p138
    // Predicated region
    $region29: #{patch_discriminator_forward.8} parent=5 // pred_check
      _
    $region30: #{patch_discriminator_forward.8} parent=5 // pred_check_branch
      %141 = sbr.rel (%p138) target = $region32
    $region31: #{patch_discriminator_forward.8} parent=5 // pred_region
      %s142 = ssub.s32 %s9, 1
      %p143 = scmp.lt.s32.totalorder %s14, 1
      %s144 = scalar_select %p143, %s14, 1
      %s145 = smul.addr %s144, 4
      %s146 = smul.addr %s145, 2
      %s147 = scalar_lea.vmem %s0, %s146
      %p148 = pneg %p35
      %p149 = pneg %p32
      %p150 = pneg %p56
      %p151 = pneg %p53
      %p152 = pneg %p77
      %p153 = pneg %p74
      %p154 = pneg %p103
      %p155 = pneg %p100
      %p156 = scmp.lt.s32.totalorder %s14, 1
      %s157 = scalar_select %p156, %s14, 1
      %s158 = smul.addr %s157, 2
      %s159 = scalar_lea.vmem %s3, %s158
      %p160 = scmp.lt.s32.totalorder %s14, 1
      %s161 = scalar_select %p160, %s14, 1
      %s162 = smul.addr %s161, 4
      %s163 = smul.addr %s162, 2
      %s164 = scalar_lea.vmem %s0, %s163
      %p165 = scmp.lt.s32.totalorder %s14, 1
      %s166 = scalar_select %p165, %s14, 1
      %s167 = smul.addr %s166, 2
      %s168 = scalar_lea.vmem %s3, %s167
      %v170 = vld [vmem:[%s164] sm:$0xff]
      %v171 = vld [vmem:[%s1] sm:$0xf]
      %v172 = vld [vmem:[%s1 + $0x4] sm:$0xf]
      %v173 = vld [vmem:[%s1 + $0x8] sm:$0xf]
      %v174 = vld [vmem:[%s1 + $0xc] sm:$0xf]
      %v175 = vld [vmem:[%s1 + $0x10] sm:$0xf]
      %v176 = vld [vmem:[%s1 + $0x14] sm:$0xf]
      %v177 = vld [vmem:[%s1 + $0x18] sm:$0xf]
      %v178 = vld [vmem:[%s1 + $0x1c] sm:$0xf]
      %v179 = vld [vmem:[%s1 + $0x20] sm:$0xf]
      %v180 = vld [vmem:[%s1 + $0x24] sm:$0xf]
      %v181 = vld [vmem:[%s1 + $0x28] sm:$0xf]
      %v182 = vld [vmem:[%s1 + $0x2c] sm:$0xf]
      %v183 = vld [vmem:[%s1 + $0x30] sm:$0xf]
      %v184 = vld [vmem:[%s1 + $0x34] sm:$0xf]
      %v185 = vld [vmem:[%s1 + $0x38] sm:$0xf]
      %v186 = vld [vmem:[%s1 + $0x3c] sm:$0xf]
      %v187 = vld [vmem:[%s1 + $0x40] sm:$0xf]
      %v188 = vld [vmem:[%s1 + $0x44] sm:$0xf]
      %v189 = vld [vmem:[%s1 + $0x48] sm:$0xf]
      %v190 = vld [vmem:[%s1 + $0x4c] sm:$0xf]
      %v191 = vld [vmem:[%s1 + $0x50] sm:$0xf]
      %v192 = vld [vmem:[%s1 + $0x54] sm:$0xf]
      %v193 = vld [vmem:[%s1 + $0x58] sm:$0xf]
      %v194 = vld [vmem:[%s1 + $0x5c] sm:$0xf]
      %v195 = vld [vmem:[%s1 + $0x60] sm:$0xf]
      %v196 = vld [vmem:[%s1 + $0x64] sm:$0xf]
      %v197 = vld [vmem:[%s1 + $0x68] sm:$0xf]
      %v198 = vld [vmem:[%s1 + $0x6c] sm:$0xf]
      %v199 = vld [vmem:[%s1 + $0x70] sm:$0xf]
      %v200 = vld [vmem:[%s1 + $0x74] sm:$0xf]
      %v201 = vld [vmem:[%s1 + $0x78] sm:$0xf]
      %v202 = vld [vmem:[%s1 + $0x7c] sm:$0xf]
      %v203 = vld [vmem:[%s1 + $0x80] sm:$0xf]
      %v204 = vld [vmem:[%s1 + $0x84] sm:$0xf]
      %v205 = vld [vmem:[%s1 + $0x88] sm:$0xf]
      %v206 = vld [vmem:[%s1 + $0x8c] sm:$0xf]
      %v207 = vld [vmem:[%s1 + $0x90] sm:$0xf]
      %v208 = vld [vmem:[%s1 + $0x94] sm:$0xf]
      %v209 = vld [vmem:[%s1 + $0x98] sm:$0xf]
      %v210 = vld [vmem:[%s1 + $0x9c] sm:$0xf]
      %v211 = vld [vmem:[%s1 + $0xa0] sm:$0xf]
      %v212 = vld [vmem:[%s1 + $0xa4] sm:$0xf]
      %v213 = vld [vmem:[%s1 + $0xa8] sm:$0xf]
      %v214 = vld [vmem:[%s1 + $0xac] sm:$0xf]
      %v215 = vld [vmem:[%s1 + $0xb0] sm:$0xf]
      %v216 = vld [vmem:[%s1 + $0xb4] sm:$0xf]
      %v217 = vld [vmem:[%s1 + $0xb8] sm:$0xf]
      %v218 = vld [vmem:[%s1 + $0xbc] sm:$0xf]
      %v219 = vld [vmem:[%s1 + $0xc0] sm:$0xf]
      %v220 = vld [vmem:[%s1 + $0xc4] sm:$0xf]
      %v221 = vld [vmem:[%s1 + $0xc8] sm:$0xf]
      %v222 = vld [vmem:[%s1 + $0xcc] sm:$0xf]
      %v223 = vld [vmem:[%s1 + $0xd0] sm:$0xf]
      %v224 = vld [vmem:[%s1 + $0xd4] sm:$0xf]
      %v225 = vld [vmem:[%s1 + $0xd8] sm:$0xf]
      %v226 = vld [vmem:[%s1 + $0xdc] sm:$0xf]
      %v227 = vld [vmem:[%s1 + $0xe0] sm:$0xf]
      %v228 = vld [vmem:[%s1 + $0xe4] sm:$0xf]
      %v229 = vld [vmem:[%s1 + $0xe8] sm:$0xf]
      %v230 = vld [vmem:[%s1 + $0xec] sm:$0xf]
      %v231 = vld [vmem:[%s1 + $0xf0] sm:$0xf]
      %v232 = vld [vmem:[%s1 + $0xf4] sm:$0xf]
      %v233 = vld [vmem:[%s1 + $0xf8] sm:$0xf]
      %v234 = vld [vmem:[%s1 + $0xfc] sm:$0xf]
      %v235 = vld [vmem:[%s2] sm:$0x1]
      %v237 = vlaneseq
      %v238 = vshrl.u32 %v237, 7
      %v239 = vsub.s32 0, %v238
      %v240 = vrot.slane %v235, %v239
      %v243 = vcombine.high %v170, %v170
      %v245 = vunpack.c.l.s4 1983009808
      %v246 = vunpack.c.0.s8 %v245
      %v247 = vlaneseq
      %v248 = vshrl.u32 %v247, 7
      %v249 = vsub.s32 %v246, %v248
      %v250 = vrot.slane %v170, %v249
      %v252 = vunpack.c.l.s4 1983009808
      %v253 = vunpack.c.0.s8 %v252
      %v254 = vlaneseq
      %v255 = vshrl.u32 %v254, 7
      %v256 = vsub.s32 %v253, %v255
      %v257 = vrot.slane %v243, %v256
      %v258 = vcombine.high %v250, %v250
      %v259 = vcombine.high %v257, %v257
      %v328 = vunpack.c.l.b16 %v171
      %v329 = vunpack.c.l.b16 %v172
      %v330 = vunpack.c.l.b16 %v173
      %v331 = vunpack.c.l.b16 %v174
      %v332 = vunpack.c.l.b16 %v175
      %v333 = vunpack.c.l.b16 %v176
      %v334 = vunpack.c.l.b16 %v177
      %v335 = vunpack.c.l.b16 %v178
      %v336 = vunpack.c.l.b16 %v179
      %v337 = vunpack.c.l.b16 %v180
      %v338 = vunpack.c.l.b16 %v181
      %v339 = vunpack.c.l.b16 %v182
      %v340 = vunpack.c.l.b16 %v183
      %v341 = vunpack.c.l.b16 %v184
      %v342 = vunpack.c.l.b16 %v185
      %v343 = vunpack.c.l.b16 %v186
      %v344 = vunpack.c.l.b16 %v187
      %v345 = vunpack.c.l.b16 %v188
      %v346 = vunpack.c.l.b16 %v189
      %v347 = vunpack.c.l.b16 %v190
      %v348 = vunpack.c.l.b16 %v191
      %v349 = vunpack.c.l.b16 %v192
      %v350 = vunpack.c.l.b16 %v193
      %v351 = vunpack.c.l.b16 %v194
      %v352 = vunpack.c.l.b16 %v195
      %v353 = vunpack.c.l.b16 %v196
      %v354 = vunpack.c.l.b16 %v197
      %v355 = vunpack.c.l.b16 %v198
      %v356 = vunpack.c.l.b16 %v199
      %v357 = vunpack.c.l.b16 %v200
      %v358 = vunpack.c.l.b16 %v201
      %v359 = vunpack.c.l.b16 %v202
      %v360 = vunpack.c.l.b16 %v203
      %v361 = vunpack.c.l.b16 %v204
      %v362 = vunpack.c.l.b16 %v205
      %v363 = vunpack.c.l.b16 %v206
      %v364 = vunpack.c.l.b16 %v207
      %v365 = vunpack.c.l.b16 %v208
      %v366 = vunpack.c.l.b16 %v209
      %v367 = vunpack.c.l.b16 %v210
      %v368 = vunpack.c.l.b16 %v211
      %v369 = vunpack.c.l.b16 %v212
      %v370 = vunpack.c.l.b16 %v213
      %v371 = vunpack.c.l.b16 %v214
      %v372 = vunpack.c.l.b16 %v215
      %v373 = vunpack.c.l.b16 %v216
      %v374 = vunpack.c.l.b16 %v217
      %v375 = vunpack.c.l.b16 %v218
      %v376 = vunpack.c.l.b16 %v219
      %v377 = vunpack.c.l.b16 %v220
      %v378 = vunpack.c.l.b16 %v221
      %v379 = vunpack.c.l.b16 %v222
      %v380 = vunpack.c.l.b16 %v223
      %v381 = vunpack.c.l.b16 %v224
      %v382 = vunpack.c.l.b16 %v225
      %v383 = vunpack.c.l.b16 %v226
      %v384 = vunpack.c.l.b16 %v227
      %v385 = vunpack.c.l.b16 %v228
      %v386 = vunpack.c.l.b16 %v229
      %v387 = vunpack.c.l.b16 %v230
      %v388 = vunpack.c.l.b16 %v231
      %v389 = vunpack.c.l.b16 %v232
      %v390 = vunpack.c.l.b16 %v233
      %v391 = vunpack.c.l.b16 %v234
      %v392 = vpack.c.b16 %v329, %v328
      %v393 = vpack.c.b16 %v331, %v330
      %v394 = vpack.c.b16 %v333, %v332
      %v395 = vpack.c.b16 %v335, %v334
      %v396 = vpack.c.b16 %v337, %v336
      %v397 = vpack.c.b16 %v339, %v338
      %v398 = vpack.c.b16 %v341, %v340
      %v399 = vpack.c.b16 %v343, %v342
      %v400 = vpack.c.b16 %v345, %v344
      %v401 = vpack.c.b16 %v347, %v346
      %v402 = vpack.c.b16 %v349, %v348
      %v403 = vpack.c.b16 %v351, %v350
      %v404 = vpack.c.b16 %v353, %v352
      %v405 = vpack.c.b16 %v355, %v354
      %v406 = vpack.c.b16 %v357, %v356
      %v407 = vpack.c.b16 %v359, %v358
      %v408 = vpack.c.b16 %v361, %v360
      %v409 = vpack.c.b16 %v363, %v362
      %v410 = vpack.c.b16 %v365, %v364
      %v411 = vpack.c.b16 %v367, %v366
      %v412 = vpack.c.b16 %v369, %v368
      %v413 = vpack.c.b16 %v371, %v370
      %v414 = vpack.c.b16 %v373, %v372
      %v415 = vpack.c.b16 %v375, %v374
      %v416 = vpack.c.b16 %v377, %v376
      %v417 = vpack.c.b16 %v379, %v378
      %v418 = vpack.c.b16 %v381, %v380
      %v419 = vpack.c.b16 %v383, %v382
      %v420 = vpack.c.b16 %v385, %v384
      %v421 = vpack.c.b16 %v387, %v386
      %v422 = vpack.c.b16 %v389, %v388
      %v423 = vpack.c.b16 %v391, %v390
      %456 = vmatprep.subr.bf16.mxu0 0
      %457 = vmatpush1.bf16.msra.mxu0 %v392
      %458 = vmatprep.subr.bf16.mxu0 0
      %459 = vmatpush1.bf16.msra.mxu0 %v393
      %460 = vmatprep.subr.bf16.mxu0 0
      %461 = vmatpush1.bf16.msra.mxu0 %v394
      %462 = vmatprep.subr.bf16.mxu0 0
      %463 = vmatpush1.bf16.msra.mxu0 %v395
      %464 = vmatprep.subr.bf16.mxu0 0
      %465 = vmatpush1.bf16.msra.mxu0 %v396
      %466 = vmatprep.subr.bf16.mxu0 0
      %467 = vmatpush1.bf16.msra.mxu0 %v397
      %468 = vmatprep.subr.bf16.mxu0 0
      %469 = vmatpush1.bf16.msra.mxu0 %v398
      %470 = vmatprep.subr.bf16.mxu0 0
      %471 = vmatpush1.bf16.msra.mxu0 %v399
      %472 = vmatprep.subr.bf16.mxu0 0
      %473 = vmatpush1.bf16.msra.mxu0 %v400
      %474 = vmatprep.subr.bf16.mxu0 0
      %475 = vmatpush1.bf16.msra.mxu0 %v401
      %476 = vmatprep.subr.bf16.mxu0 0
      %477 = vmatpush1.bf16.msra.mxu0 %v402
      %478 = vmatprep.subr.bf16.mxu0 0
      %479 = vmatpush1.bf16.msra.mxu0 %v403
      %480 = vmatprep.subr.bf16.mxu0 0
      %481 = vmatpush1.bf16.msra.mxu0 %v404
      %482 = vmatprep.subr.bf16.mxu0 0
      %483 = vmatpush1.bf16.msra.mxu0 %v405
      %484 = vmatprep.subr.bf16.mxu0 0
      %485 = vmatpush1.bf16.msra.mxu0 %v406
      %486 = vmatprep.subr.bf16.mxu0 0
      %487 = vmatpush1.bf16.msra.mxu0 %v407
      %488 = vmatprep.mubr.bf16.mxu0 %v258
      %489 = vmatmul.mubr.bf16.gmra.mrb[0].mxu0 %v250
      %v490 = vpop.f32.mrb[0].mxu0
      %v491 = vadd.f32 %v240, %v490
      %v492 = vpop.f32.mrb[0].mxu0
      %v493 = vpop.f32.mrb[0].mxu0
      %v494 = vpop.f32.mrb[0].mxu0
      %495 = vdwg.mxu0
      %496 = vmatprep.subr.bf16.mxu0 0
      %497 = vmatpush1.bf16.msra.mxu0 %v408
      %498 = vmatprep.subr.bf16.mxu0 0
      %499 = vmatpush1.bf16.msra.mxu0 %v409
      %500 = vmatprep.subr.bf16.mxu0 0
      %501 = vmatpush1.bf16.msra.mxu0 %v410
      %502 = vmatprep.subr.bf16.mxu0 0
      %503 = vmatpush1.bf16.msra.mxu0 %v411
      %504 = vmatprep.subr.bf16.mxu0 0
      %505 = vmatpush1.bf16.msra.mxu0 %v412
      %506 = vmatprep.subr.bf16.mxu0 0
      %507 = vmatpush1.bf16.msra.mxu0 %v413
      %508 = vmatprep.subr.bf16.mxu0 0
      %509 = vmatpush1.bf16.msra.mxu0 %v414
      %510 = vmatprep.subr.bf16.mxu0 0
      %511 = vmatpush1.bf16.msra.mxu0 %v415
      %512 = vmatprep.subr.bf16.mxu0 0
      %513 = vmatpush1.bf16.msra.mxu0 %v416
      %514 = vmatprep.subr.bf16.mxu0 0
      %515 = vmatpush1.bf16.msra.mxu0 %v417
      %516 = vmatprep.subr.bf16.mxu0 0
      %517 = vmatpush1.bf16.msra.mxu0 %v418
      %518 = vmatprep.subr.bf16.mxu0 0
      %519 = vmatpush1.bf16.msra.mxu0 %v419
      %520 = vmatprep.subr.bf16.mxu0 0
      %521 = vmatpush1.bf16.msra.mxu0 %v420
      %522 = vmatprep.subr.bf16.mxu0 0
      %523 = vmatpush1.bf16.msra.mxu0 %v421
      %524 = vmatprep.subr.bf16.mxu0 0
      %525 = vmatpush1.bf16.msra.mxu0 %v422
      %526 = vmatprep.subr.bf16.mxu0 0
      %527 = vmatpush1.bf16.msra.mxu0 %v423
      %528 = vmatprep.mubr.bf16.mxu0 %v259
      %529 = vmatmul.mubr.bf16.gmra.mrb[0].mxu0 %v257
      %v530 = vpop.f32.mrb[0].mxu0
      %v531 = vadd.f32 %v491, %v530
      %v532 = vpop.f32.mrb[0].mxu0
      %v533 = vpop.f32.mrb[0].mxu0
      %v534 = vpop.f32.mrb[0].mxu0
      %535 = vdwg.mxu0
      %vm536 = vcmask 1043456
      %v537 = vsel %vm536, %v531, 0.0
      %v538 = vrot.slane %v537, 4
      %v539 = vadd.f32 %v537, %v538
      %v540 = vrot.slane %v539, 2
      %v541 = vadd.f32 %v539, %v540
      %v542 = vrot.slane %v541, 1
      %v543 = vadd.f32 %v541, %v542
      %v544 = vrcp.pop 4.0
      %v545 = vmul.f32 %v543, %v544
      %v546 = vsub.f32 %v531, %v545
      %v547 = vmul.f32 %v546, %v546
      %v548 = vsel %vm536, %v547, 0.0
      %v549 = vrot.slane %v548, 4
      %v550 = vadd.f32 %v548, %v549
      %v551 = vrot.slane %v550, 2
      %v552 = vadd.f32 %v550, %v551
      %v553 = vrot.slane %v552, 1
      %v554 = vadd.f32 %v552, %v553
      %v555 = vmul.f32 %v554, %v544
      %v556 = vadd.f32 %v555, 1e-05
      %v557 = vrsqrt.pop %v556
      %v558 = vmul.f32 %v546, %v557
      %vm559 = vcmp.ge.f32.partialorder %v558, 0.0
      %v560 = vmul.f32 %v558, 0.2
      %v561 = vsel %vm559, %v558, %v560
      %v562 = vpack.c.bf16 %v561, %v561
      %563 = vst [vmem:[%s168] sm:$0x3] %v562
      %p564 = scmp.lt.s32.totalorder %s14, 1
      %s565 = scalar_select %p564, %s14, 1
      %s566 = smul.addr %s565, 2
      %s567 = scalar_lea.vmem %s3, %s566
      // Predicated region
      $region33: #{patch_discriminator_forward.8} parent=31 // pred_check
        %p568 = pneg %p100
      $region34: #{patch_discriminator_forward.8} parent=31 // pred_check_branch
        %570 = sbr.rel (%p568) target = $region36
      $region35: #{patch_discriminator_forward.8} parent=31 // pred_region
        _
      $region36: #{patch_discriminator_forward.8} parent=31 // pred_fallthru
        _
    $region32: #{patch_discriminator_forward.8} parent=5 // pred_fallthru
      _
    %p571 = scmp.le.s32.totalorder 2, %s9
    // Predicated region
    $region37: #{patch_discriminator_forward.8} parent=5 // pred_check
      %p572 = pneg %p571
    $region38: #{patch_discriminator_forward.8} parent=5 // pred_check_branch
      %574 = sbr.rel (%p572) target = $region40
    $region39: #{patch_discriminator_forward.8} parent=5 // pred_region
      %s575 = ssub.s32 %s9, 2
      // Predicated region
      $region41: #{patch_discriminator_forward.8} parent=39 // pred_check
        %p576 = pneg %p106
      $region42: #{patch_discriminator_forward.8} parent=39 // pred_check_branch
        %578 = sbr.rel (%p576) target = $region44
      $region43: #{patch_discriminator_forward.8} parent=39 // pred_region
        %p579 = scmp.lt.s32.totalorder %s15, 1
        %s580 = scalar_select %p579, %s15, 1
        %s581 = smul.addr %s580, 2
        %s582 = scalar_lea.vmem %s3, %s581
      $region44: #{patch_discriminator_forward.8} parent=39 // pred_fallthru
        _
    $region40: #{patch_discriminator_forward.8} parent=5 // pred_fallthru
      _
  $region6: #{patch_discriminator_forward.8} parent=0 // loop_footer
    %s13 = sadd.s32 1, %s9
  $region7: #{patch_discriminator_forward.8} parent=0 // loop_footer_branch
    %8 = sbr.rel target = $region3
  $region8: #{patch_discriminator_forward.8} parent=0 // loop_exit
    _

// kernel: patch_discriminator_forward.9
$region0: #{patch_discriminator_forward.9}
  #allocation0 [shape = 'u32[]', space=smem, size = 0x4, offset = 0x4, fixed_abs, tag = 'smem constant byte address 0x4 - core index']
  #allocation1 [shape = 'u32[144,128]{1,0:T(1,128)}', space=vmem, size = 0x12000, scoped, tag = 'internal scratch']
  %s0 = inlined_call_operand.vmem [shape: bf16[1,8,640], index: 0, kind: input, shape index: {}]
  %s1 = inlined_call_operand.vmem [shape: bf16[640,128], index: 1, kind: input, shape index: {}]
  %s2 = inlined_call_operand.vmem [shape: f32[1,128], index: 2, kind: input, shape index: {}]
  %s3 = inlined_call_operand.vmem [shape: f32[1,8,128], index: 3, kind: output, shape index: {}]
  %s4 = sld [smem:[#allocation0]]
  $region22: #{patch_discriminator_forward.9} parent=0
    _
  %s6 = ssub.s32 1, %s4
  %s7 = scalar_select 0, %s6, %s4
  // Predicated region
  $region2: #{patch_discriminator_forward.9} parent=0 // pred_check
    _
  $region3: #{patch_discriminator_forward.9} parent=0 // pred_check_branch
    %9 = sbr.rel (0) target = $region5
  $region4: #{patch_discriminator_forward.9} parent=0 // pred_region
    _
  $region5: #{patch_discriminator_forward.9} parent=0 // pred_fallthru
    _
  // Predicated region
  $region6: #{patch_discriminator_forward.9} parent=0 // pred_check
    _
  $region7: #{patch_discriminator_forward.9} parent=0 // pred_check_branch
    %11 = sbr.rel (0) target = $region9
  $region8: #{patch_discriminator_forward.9} parent=0 // pred_region
    _
  $region9: #{patch_discriminator_forward.9} parent=0 // pred_fallthru
    _
  // Predicated region
  $region10: #{patch_discriminator_forward.9} parent=0 // pred_check
    _
  $region11: #{patch_discriminator_forward.9} parent=0 // pred_check_branch
    %13 = sbr.rel (0) target = $region13
  $region12: #{patch_discriminator_forward.9} parent=0 // pred_region
    _
  $region13: #{patch_discriminator_forward.9} parent=0 // pred_fallthru
    _
  %v15 = vld [vmem:[%s0] sm:$0xff]
  %v16 = vld [vmem:[%s0 + $0x8] sm:$0xff]
  %v17 = vld [vmem:[%s0 + $0x10] sm:$0xf]
  %v18 = vld [vmem:[%s1] sm:$0xf]
  %v19 = vld [vmem:[%s1 + $0x4] sm:$0xf]
  %v20 = vld [vmem:[%s1 + $0x8] sm:$0xf]
  %v21 = vld [vmem:[%s1 + $0xc] sm:$0xf]
  %v22 = vld [vmem:[%s1 + $0x10] sm:$0xf]
  %v23 = vld [vmem:[%s1 + $0x14] sm:$0xf]
  %v24 = vld [vmem:[%s1 + $0x18] sm:$0xf]
  %v25 = vld [vmem:[%s1 + $0x1c] sm:$0xf]
  %v26 = vld [vmem:[%s1 + $0x20] sm:$0xf]
  %v27 = vld [vmem:[%s1 + $0x24] sm:$0xf]
  %v28 = vld [vmem:[%s1 + $0x28] sm:$0xf]
  %v29 = vld [vmem:[%s1 + $0x2c] sm:$0xf]
  %v30 = vld [vmem:[%s1 + $0x30] sm:$0xf]
  %v31 = vld [vmem:[%s1 + $0x34] sm:$0xf]
  %v32 = vld [vmem:[%s1 + $0x38] sm:$0xf]
  %v33 = vld [vmem:[%s1 + $0x3c] sm:$0xf]
  %v34 = vld [vmem:[%s1 + $0x40] sm:$0xf]
  %v35 = vld [vmem:[%s1 + $0x44] sm:$0xf]
  %v36 = vld [vmem:[%s1 + $0x48] sm:$0xf]
  %v37 = vld [vmem:[%s1 + $0x4c] sm:$0xf]
  %v38 = vld [vmem:[%s1 + $0x50] sm:$0xf]
  %v39 = vld [vmem:[%s1 + $0x54] sm:$0xf]
  %v40 = vld [vmem:[%s1 + $0x58] sm:$0xf]
  %v41 = vld [vmem:[%s1 + $0x5c] sm:$0xf]
  %v42 = vld [vmem:[%s1 + $0x60] sm:$0xf]
  %v43 = vld [vmem:[%s1 + $0x64] sm:$0xf]
  %v44 = vld [vmem:[%s1 + $0x68] sm:$0xf]
  %v45 = vld [vmem:[%s1 + $0x6c] sm:$0xf]
  %v46 = vld [vmem:[%s1 + $0x70] sm:$0xf]
  %v47 = vld [vmem:[%s1 + $0x74] sm:$0xf]
  %v48 = vld [vmem:[%s1 + $0x78] sm:$0xf]
  %v49 = vld [vmem:[%s1 + $0x7c] sm:$0xf]
  %v50 = vld [vmem:[%s1 + $0x80] sm:$0xf]
  %v51 = vld [vmem:[%s1 + $0x84] sm:$0xf]
  %v52 = vld [vmem:[%s1 + $0x88] sm:$0xf]
  %v53 = vld [vmem:[%s1 + $0x8c] sm:$0xf]
  %v54 = vld [vmem:[%s1 + $0x90] sm:$0xf]
  %v55 = vld [vmem:[%s1 + $0x94] sm:$0xf]
  %v56 = vld [vmem:[%s1 + $0x98] sm:$0xf]
  %v57 = vld [vmem:[%s1 + $0x9c] sm:$0xf]
  %v58 = vld [vmem:[%s1 + $0xa0] sm:$0xf]
  %v59 = vld [vmem:[%s1 + $0xa4] sm:$0xf]
  %v60 = vld [vmem:[%s1 + $0xa8] sm:$0xf]
  %v61 = vld [vmem:[%s1 + $0xac] sm:$0xf]
  %v62 = vld [vmem:[%s1 + $0xb0] sm:$0xf]
  %v63 = vld [vmem:[%s1 + $0xb4] sm:$0xf]
  %v64 = vld [vmem:[%s1 + $0xb8] sm:$0xf]
  %v65 = vld [vmem:[%s1 + $0xbc] sm:$0xf]
  %v66 = vld [vmem:[%s1 + $0xc0] sm:$0xf]
  %v67 = vld [vmem:[%s1 + $0xc4] sm:$0xf]
  %v68 = vld [vmem:[%s1 + $0xc8] sm:$0xf]
  %v69 = vld [vmem:[%s1 + $0xcc] sm:$0xf]
  %v70 = vld [vmem:[%s1 + $0xd0] sm:$0xf]
  %v71 = vld [vmem:[%s1 + $0xd4] sm:$0xf]
  %v72 = vld [vmem:[%s1 + $0xd8] sm:$0xf]
  %v73 = vld [vmem:[%s1 + $0xdc] sm:$0xf]
  %v74 = vld [vmem:[%s1 + $0xe0] sm:$0xf]
  %v75 = vld [vmem:[%s1 + $0xe4] sm:$0xf]
  %v76 = vld [vmem:[%s1 + $0xe8] sm:$0xf]
  %v77 = vld [vmem:[%s1 + $0xec] sm:$0xf]
  %v78 = vld [vmem:[%s1 + $0xf0] sm:$0xf]
  %v79 = vld [vmem:[%s1 + $0xf4] sm:$0xf]
  %v80 = vld [vmem:[%s1 + $0xf8] sm:$0xf]
  %v81 = vld [vmem:[%s1 + $0xfc] sm:$0xf]
  %v82 = vld [vmem:[%s1 + $0x100] sm:$0xf]
  %v83 = vld [vmem:[%s1 + $0x104] sm:$0xf]
  %v84 = vld [vmem:[%s1 + $0x108] sm:$0xf]
  %v85 = vld [vmem:[%s1 + $0x10c] sm:$0xf]
  %v86 = vld [vmem:[%s1 + $0x110] sm:$0xf]
  %v87 = vld [vmem:[%s1 + $0x114] sm:$0xf]
  %v88 = vld [vmem:[%s1 + $0x118] sm:$0xf]
  %v89 = vld [vmem:[%s1 + $0x11c] sm:$0xf]
  %v90 = vld [vmem:[%s1 + $0x120] sm:$0xf]
  %v91 = vld [vmem:[%s1 + $0x124] sm:$0xf]
  %v92 = vld [vmem:[%s1 + $0x128] sm:$0xf]
  %v93 = vld [vmem:[%s1 + $0x12c] sm:$0xf]
  %v94 = vld [vmem:[%s1 + $0x130] sm:$0xf]
  %v95 = vld [vmem:[%s1 + $0x134] sm:$0xf]
  %v96 = vld [vmem:[%s1 + $0x138] sm:$0xf]
  %v97 = vld [vmem:[%s1 + $0x13c] sm:$0xf]
  %v98 = vld [vmem:[%s2] sm:$0x1]
  %v100 = vlaneseq
  %v101 = vshrl.u32 %v100, 7
  %v102 = vsub.s32 0, %v101
  %v103 = vrot.slane %v98, %v102
  %v108 = vunpack.c.l.b16 %v15
  %v109 = vunpack.c.h.b16 %v15
  %v110 = vunpack.c.l.b16 %v16
  %v111 = vunpack.c.h.b16 %v16
  %v112 = vunpack.c.l.b16 %v17
  %v113 = vpack.c.b16 %v108, %v108
  %v114 = vpack.c.b16 %v109, %v109
  %v115 = vpack.c.b16 %v110, %v110
  %v116 = vpack.c.b16 %v111, %v111
  %v117 = vpack.c.b16 %v112, %v112
  %v203 = vunpack.c.l.b16 %v18
  %v204 = vunpack.c.l.b16 %v19
  %v205 = vunpack.c.l.b16 %v20
  %v206 = vunpack.c.l.b16 %v21
  %v207 = vunpack.c.l.b16 %v22
  %v208 = vunpack.c.l.b16 %v23
  %v209 = vunpack.c.l.b16 %v24
  %v210 = vunpack.c.l.b16 %v25
  %v211 = vunpack.c.l.b16 %v26
  %v212 = vunpack.c.l.b16 %v27
  %v213 = vunpack.c.l.b16 %v28
  %v214 = vunpack.c.l.b16 %v29
  %v215 = vunpack.c.l.b16 %v30
  %v216 = vunpack.c.l.b16 %v31
  %v217 = vunpack.c.l.b16 %v32
  %v218 = vunpack.c.l.b16 %v33
  %v219 = vunpack.c.l.b16 %v34
  %v220 = vunpack.c.l.b16 %v35
  %v221 = vunpack.c.l.b16 %v36
  %v222 = vunpack.c.l.b16 %v37
  %v223 = vunpack.c.l.b16 %v38
  %v224 = vunpack.c.l.b16 %v39
  %v225 = vunpack.c.l.b16 %v40
  %v226 = vunpack.c.l.b16 %v41
  %v227 = vunpack.c.l.b16 %v42
  %v228 = vunpack.c.l.b16 %v43
  %v229 = vunpack.c.l.b16 %v44
  %v230 = vunpack.c.l.b16 %v45
  %v231 = vunpack.c.l.b16 %v46
  %v232 = vunpack.c.l.b16 %v47
  %v233 = vunpack.c.l.b16 %v48
  %v234 = vunpack.c.l.b16 %v49
  %v235 = vunpack.c.l.b16 %v50
  %v236 = vunpack.c.l.b16 %v51
  %v237 = vunpack.c.l.b16 %v52
  %v238 = vunpack.c.l.b16 %v53
  %v239 = vunpack.c.l.b16 %v54
  %v240 = vunpack.c.l.b16 %v55
  %v241 = vunpack.c.l.b16 %v56
  %v242 = vunpack.c.l.b16 %v57
  %v243 = vunpack.c.l.b16 %v58
  %v244 = vunpack.c.l.b16 %v59
  %v245 = vunpack.c.l.b16 %v60
  %v246 = vunpack.c.l.b16 %v61
  %v247 = vunpack.c.l.b16 %v62
  %v248 = vunpack.c.l.b16 %v63
  %v249 = vunpack.c.l.b16 %v64
  %v250 = vunpack.c.l.b16 %v65
  %v251 = vunpack.c.l.b16 %v66
  %v252 = vunpack.c.l.b16 %v67
  %v253 = vunpack.c.l.b16 %v68
  %v254 = vunpack.c.l.b16 %v69
  %v255 = vunpack.c.l.b16 %v70
  %v256 = vunpack.c.l.b16 %v71
  %v257 = vunpack.c.l.b16 %v72
  %v258 = vunpack.c.l.b16 %v73
  %v259 = vunpack.c.l.b16 %v74
  %v260 = vunpack.c.l.b16 %v75
  %v261 = vunpack.c.l.b16 %v76
  %v262 = vunpack.c.l.b16 %v77
  %v263 = vunpack.c.l.b16 %v78
  %v264 = vunpack.c.l.b16 %v79
  %v265 = vunpack.c.l.b16 %v80
  %v266 = vunpack.c.l.b16 %v81
  %v267 = vunpack.c.l.b16 %v82
  %v268 = vunpack.c.l.b16 %v83
  %v269 = vunpack.c.l.b16 %v84
  %v270 = vunpack.c.l.b16 %v85
  %v271 = vunpack.c.l.b16 %v86
  %v272 = vunpack.c.l.b16 %v87
  %v273 = vunpack.c.l.b16 %v88
  %v274 = vunpack.c.l.b16 %v89
  %v275 = vunpack.c.l.b16 %v90
  %v276 = vunpack.c.l.b16 %v91
  %v277 = vunpack.c.l.b16 %v92
  %v278 = vunpack.c.l.b16 %v93
  %v279 = vunpack.c.l.b16 %v94
  %v280 = vunpack.c.l.b16 %v95
  %v281 = vunpack.c.l.b16 %v96
  %v282 = vunpack.c.l.b16 %v97
  %v283 = vpack.c.b16 %v204, %v203
  %v284 = vpack.c.b16 %v206, %v205
  %v285 = vpack.c.b16 %v208, %v207
  %v286 = vpack.c.b16 %v210, %v209
  %v287 = vpack.c.b16 %v212, %v211
  %v288 = vpack.c.b16 %v214, %v213
  %v289 = vpack.c.b16 %v216, %v215
  %v290 = vpack.c.b16 %v218, %v217
  %v291 = vpack.c.b16 %v220, %v219
  %v292 = vpack.c.b16 %v222, %v221
  %v293 = vpack.c.b16 %v224, %v223
  %v294 = vpack.c.b16 %v226, %v225
  %v295 = vpack.c.b16 %v228, %v227
  %v296 = vpack.c.b16 %v230, %v229
  %v297 = vpack.c.b16 %v232, %v231
  %v298 = vpack.c.b16 %v234, %v233
  %v299 = vpack.c.b16 %v236, %v235
  %v300 = vpack.c.b16 %v238, %v237
  %v301 = vpack.c.b16 %v240, %v239
  %v302 = vpack.c.b16 %v242, %v241
  %v303 = vpack.c.b16 %v244, %v243
  %v304 = vpack.c.b16 %v246, %v245
  %v305 = vpack.c.b16 %v248, %v247
  %v306 = vpack.c.b16 %v250, %v249
  %v307 = vpack.c.b16 %v252, %v251
  %v308 = vpack.c.b16 %v254, %v253
  %v309 = vpack.c.b16 %v256, %v255
  %v310 = vpack.c.b16 %v258, %v257
  %v311 = vpack.c.b16 %v260, %v259
  %v312 = vpack.c.b16 %v262, %v261
  %v313 = vpack.c.b16 %v264, %v263
  %v314 = vpack.c.b16 %v266, %v265
  %v315 = vpack.c.b16 %v268, %v267
  %v316 = vpack.c.b16 %v270, %v269
  %v317 = vpack.c.b16 %v272, %v271
  %v318 = vpack.c.b16 %v274, %v273
  %v319 = vpack.c.b16 %v276, %v275
  %v320 = vpack.c.b16 %v278, %v277
  %v321 = vpack.c.b16 %v280, %v279
  %v322 = vpack.c.b16 %v282, %v281
  %363 = vmatprep.subr.bf16.mxu0 0
  %364 = vmatpush1.bf16.msra.mxu0 %v283
  %365 = vmatprep.subr.bf16.mxu0 0
  %366 = vmatpush1.bf16.msra.mxu0 %v284
  %367 = vmatprep.subr.bf16.mxu0 0
  %368 = vmatpush1.bf16.msra.mxu0 %v285
  %369 = vmatprep.subr.bf16.mxu0 0
  %370 = vmatpush1.bf16.msra.mxu0 %v286
  %371 = vmatprep.subr.bf16.mxu0 0
  %372 = vmatpush1.bf16.msra.mxu0 %v287
  %373 = vmatprep.subr.bf16.mxu0 0
  %374 = vmatpush1.bf16.msra.mxu0 %v288
  %375 = vmatprep.subr.bf16.mxu0 0
  %376 = vmatpush1.bf16.msra.mxu0 %v289
  %377 = vmatprep.subr.bf16.mxu0 0
  %378 = vmatpush1.bf16.msra.mxu0 %v290
  %379 = vmatprep.subr.bf16.mxu0 0
  %380 = vmatpush1.bf16.msra.mxu0 %v291
  %381 = vmatprep.subr.bf16.mxu0 0
  %382 = vmatpush1.bf16.msra.mxu0 %v292
  %383 = vmatprep.subr.bf16.mxu0 0
  %384 = vmatpush1.bf16.msra.mxu0 %v293
  %385 = vmatprep.subr.bf16.mxu0 0
  %386 = vmatpush1.bf16.msra.mxu0 %v294
  %387 = vmatprep.subr.bf16.mxu0 0
  %388 = vmatpush1.bf16.msra.mxu0 %v295
  %389 = vmatprep.subr.bf16.mxu0 0
  %390 = vmatpush1.bf16.msra.mxu0 %v296
  %391 = vmatprep.subr.bf16.mxu0 0
  %392 = vmatpush1.bf16.msra.mxu0 %v297
  %393 = vmatprep.subr.bf16.mxu0 0
  %394 = vmatpush1.bf16.msra.mxu0 %v298
  %395 = vmatprep.mubr.bf16.mxu0 %v114
  %396 = vmatmul.mubr.bf16.gmra.mrb[0].mxu0 %v113
  %v397 = vpop.f32.mrb[0].mxu0
  %v398 = vadd.f32 %v103, %v397
  %v399 = vpop.f32.mrb[0].mxu0
  %v400 = vpop.f32.mrb[0].mxu0
  %v401 = vpop.f32.mrb[0].mxu0
  %402 = vdwg.mxu0
  %403 = vmatprep.subr.bf16.mxu0 0
  %404 = vmatpush1.bf16.msra.mxu0 %v299
  %405 = vmatprep.subr.bf16.mxu0 0
  %406 = vmatpush1.bf16.msra.mxu0 %v300
  %407 = vmatprep.subr.bf16.mxu0 0
  %408 = vmatpush1.bf16.msra.mxu0 %v301
  %409 = vmatprep.subr.bf16.mxu0 0
  %410 = vmatpush1.bf16.msra.mxu0 %v302
  %411 = vmatprep.subr.bf16.mxu0 0
  %412 = vmatpush1.bf16.msra.mxu0 %v303
  %413 = vmatprep.subr.bf16.mxu0 0
  %414 = vmatpush1.bf16.msra.mxu0 %v304
  %415 = vmatprep.subr.bf16.mxu0 0
  %416 = vmatpush1.bf16.msra.mxu0 %v305
  %417 = vmatprep.subr.bf16.mxu0 0
  %418 = vmatpush1.bf16.msra.mxu0 %v306
  %419 = vmatprep.subr.bf16.mxu0 0
  %420 = vmatpush1.bf16.msra.mxu0 %v307
  %421 = vmatprep.subr.bf16.mxu0 0
  %422 = vmatpush1.bf16.msra.mxu0 %v308
  %423 = vmatprep.subr.bf16.mxu0 0
  %424 = vmatpush1.bf16.msra.mxu0 %v309
  %425 = vmatprep.subr.bf16.mxu0 0
  %426 = vmatpush1.bf16.msra.mxu0 %v310
  %427 = vmatprep.subr.bf16.mxu0 0
  %428 = vmatpush1.bf16.msra.mxu0 %v311
  %429 = vmatprep.subr.bf16.mxu0 0
  %430 = vmatpush1.bf16.msra.mxu0 %v312
  %431 = vmatprep.subr.bf16.mxu0 0
  %432 = vmatpush1.bf16.msra.mxu0 %v313
  %433 = vmatprep.subr.bf16.mxu0 0
  %434 = vmatpush1.bf16.msra.mxu0 %v314
  %435 = vmatprep.mubr.bf16.mxu0 %v116
  %436 = vmatmul.mubr.bf16.gmra.mrb[0].mxu0 %v115
  %v437 = vpop.f32.mrb[0].mxu0
  %v438 = vadd.f32 %v398, %v437
  %v439 = vpop.f32.mrb[0].mxu0
  %v440 = vpop.f32.mrb[0].mxu0
  %v441 = vpop.f32.mrb[0].mxu0
  %442 = vdwg.mxu0
  %443 = vmatprep.subr.bf16.mxu0 0
  %444 = vmatpush1.bf16.msra.mxu0 %v315
  %445 = vmatprep.subr.bf16.mxu0 0
  %446 = vmatpush1.bf16.msra.mxu0 %v316
  %447 = vmatprep.subr.bf16.mxu0 0
  %448 = vmatpush1.bf16.msra.mxu0 %v317
  %449 = vmatprep.subr.bf16.mxu0 0
  %450 = vmatpush1.bf16.msra.mxu0 %v318
  %451 = vmatprep.subr.bf16.mxu0 0
  %452 = vmatpush1.bf16.msra.mxu0 %v319
  %453 = vmatprep.subr.bf16.mxu0 0
  %454 = vmatpush1.bf16.msra.mxu0 %v320
  %455 = vmatprep.subr.bf16.mxu0 0
  %456 = vmatpush1.bf16.msra.mxu0 %v321
  %457 = vmatprep.subr.bf16.mxu0 0
  %458 = vmatpush1.bf16.msra.mxu0 %v322
  %459 = vmatprep.subr.bf16.mxu0 0
  %460 = vmatpush1.bf16.msra.mxu0 0
  %461 = vmatprep.subr.bf16.mxu0 0
  %462 = vmatpush1.bf16.msra.mxu0 0
  %463 = vmatprep.subr.bf16.mxu0 0
  %464 = vmatpush1.bf16.msra.mxu0 0
  %465 = vmatprep.subr.bf16.mxu0 0
  %466 = vmatpush1.bf16.msra.mxu0 0
  %467 = vmatprep.subr.bf16.mxu0 0
  %468 = vmatpush1.bf16.msra.mxu0 0
  %469 = vmatprep.subr.bf16.mxu0 0
  %470 = vmatpush1.bf16.msra.mxu0 0
  %471 = vmatprep.subr.bf16.mxu0 0
  %472 = vmatpush1.bf16.msra.mxu0 0
  %473 = vmatprep.subr.bf16.mxu0 0
  %474 = vmatpush1.bf16.msra.mxu0 0
  %475 = vmatprep.mubr.bf16.mxu0 0
  %476 = vmatmul.mubr.bf16.gmra.mrb[0].mxu0 %v117
  %v477 = vpop.f32.mrb[0].mxu0
  %v478 = vadd.f32 %v438, %v477
  %v479 = vpop.f32.mrb[0].mxu0
  %v480 = vpop.f32.mrb[0].mxu0
  %v481 = vpop.f32.mrb[0].mxu0
  %482 = vdwg.mxu0
  %483 = vst [vmem:[%s3] sm:$0xff] %v478
  // Predicated region
  $region14: #{patch_discriminator_forward.9} parent=0 // pred_check
    _
  $region15: #{patch_discriminator_forward.9} parent=0 // pred_check_branch
    %485 = sbr.rel (0) target = $region17
  $region16: #{patch_discriminator_forward.9} parent=0 // pred_region
    _
  $region17: #{patch_discriminator_forward.9} parent=0 // pred_fallthru
    _
  // Predicated region
  $region18: #{patch_discriminator_forward.9} parent=0 // pred_check
    _
  $region19: #{patch_discriminator_forward.9} parent=0 // pred_check_branch
    %487 = sbr.rel (0) target = $region21
  $region20: #{patch_discriminator_forward.9} parent=0 // pred_region
    _
  $region21: #{patch_discriminator_forward.9} parent=0 // pred_fallthru
    _

</llo_original>
